<compile_context>
chip_gen: v6e
topology: v6e:2x2x1
jax: 0.10.0
libtpu: 0.0.40
codegen_flags: <defaults>
</compile_context>

<pallas_src>
import functools

import jax
import jax.numpy as jnp
from jax.experimental import pallas as pl
from jax.experimental.pallas import tpu as pltpu


def lstm_kernel(x_ref, wih_ref, whh_ref, b_ref, out_ref, cn_ref):
    B, Hp = cn_ref.shape
    S = out_ref.shape[0] // B

    # ---- hoisted input projection (+ fused bias): one (S*B, I) @ (I, 4*Hp)
    # MXU matmul, kept as a vreg value (no scratch round-trip).
    gx = (jnp.dot(x_ref[...], wih_ref[...],
                  preferred_element_type=jnp.float32)
          + b_ref[...])                          # (S*B, 4*Hp), gates i,f,o,g

    whh = whh_ref[...]                           # (Hp, 4*Hp), loaded once

    h = jnp.zeros((B, Hp), jnp.float32)
    c = jnp.zeros((B, Hp), jnp.float32)
    hs = []

    # ---- fully-unrolled recurrence over the static, tiny time axis.
    for t in range(S):
        gates = gx[t * B:(t + 1) * B, :] + jnp.dot(
            h, whh, preferred_element_type=jnp.float32)          # (B, 4*Hp)

        # One EUP tanh covers i/f/o via sigmoid(x) = 0.5*tanh(0.5*x) + 0.5,
        # one EUP tanh covers the cell gate g.
        ifo = 0.5 * jnp.tanh(0.5 * gates[:, :3 * Hp]) + 0.5      # (B, 3*Hp)
        g_g = jnp.tanh(gates[:, 3 * Hp:4 * Hp])                  # (B, Hp)
        i_g = ifo[:, 0 * Hp:1 * Hp]
        f_g = ifo[:, 1 * Hp:2 * Hp]
        o_g = ifo[:, 2 * Hp:3 * Hp]

        c = f_g * c + i_g * g_g
        h = o_g * jnp.tanh(c)
        hs.append(h)

    # ---- single dense writeback of the whole output slab + final cell state.
    out_ref[...] = jnp.concatenate(hs, axis=0)   # (S*B, Hp)
    cn_ref[...] = c                              # (B, Hp)


def prepare_lstm_params(w_ih, w_hh, b_ih, b_hh):
    """One-time packing of PyTorch nn.LSTM params for the Pallas kernel.

    Transposes to (in, 4H) layouts, fuses b_ih + b_hh, reorders gates
    (i, f, g, o) -> (i, f, o, g), zero-pads each gate to Hp = 128 lanes and
    the hidden (contraction) dim of W_hh to Hp.  The zero padding must be
    preserved (padded lanes stay exactly zero through the recurrence).
    """
    f32 = jnp.float32
    H = w_hh.shape[1]
    Hp = ((H + 127) // 128) * 128
    perm = [0, 1, 3, 2]                          # i, f, g, o -> i, f, o, g

    def pack(w):                                 # (R, 4H) -> (R, 4*Hp)
        r = w.shape[0]
        w4 = w.reshape(r, 4, H)[:, perm, :]
        w4 = jnp.pad(w4, ((0, 0), (0, 0), (0, Hp - H)))
        return w4.reshape(r, 4 * Hp)

    w_ih_t = jnp.asarray(w_ih, f32).T            # (I, 4H)
    w_hh_t = jnp.asarray(w_hh, f32).T            # (H, 4H)
    bias = (jnp.asarray(b_ih, f32) + jnp.asarray(b_hh, f32)).reshape(1, 4 * H)

    wih_p = pack(w_ih_t)                                     # (I,  4*Hp)
    whh_p = jnp.pad(pack(w_hh_t), ((0, Hp - H), (0, 0)))     # (Hp, 4*Hp)
    b_p = pack(bias)                                         # (1,  4*Hp)
    return wih_p, whh_p, b_p, H


@functools.partial(jax.jit, static_argnames=("hidden",))
def lstm_forward(x, wih_p, whh_p, b_p, *, hidden):
    """x: (seq, batch, input); packed params from prepare_lstm_params.

    Returns (output (S, B, H), (h_n (1, B, H), c_n (1, B, H))) matching
    torch.nn.LSTM semantics with zero initial states.
    """
    S, B, I = x.shape
    Hp = whh_p.shape[0]
    f32 = jnp.float32

    x2 = jnp.asarray(x, f32).reshape(S * B, I)   # lane/sublane-dense slab

    vmem = pl.BlockSpec(memory_space=pltpu.MemorySpace.VMEM)
    out_p, cn_p = pl.pallas_call(
        lstm_kernel,
        out_shape=(jax.ShapeDtypeStruct((S * B, Hp), f32),   # padded outputs
                   jax.ShapeDtypeStruct((B, Hp), f32)),      # padded c_n
        in_specs=[vmem, vmem, vmem, vmem],
        out_specs=(vmem, vmem),
    )(x2, wih_p, whh_p, b_p)

    # Wrapper-side layout plumbing: slice real hidden width, derive h_n.
    out = out_p.reshape(S, B, Hp)[:, :, :hidden]
    h_n = out[-1:]                               # h_n == last output step
    c_n = cn_p[None, :, :hidden]
    return out, (h_n, c_n)


def lstm_reference(x, w_ih, w_hh, b_ih, b_hh):
    """Pure-JAX reference (lax.scan) mirroring torch.nn.LSTM."""
    bias = b_ih + b_hh

    def step(carry, x_t):
        h, c = carry
        gates = x_t @ w_ih.T + h @ w_hh.T + bias
        i_g, f_g, g_g, o_g = jnp.split(gates, 4, axis=-1)
        i_g = jax.nn.sigmoid(i_g)
        f_g = jax.nn.sigmoid(f_g)
        g_g = jnp.tanh(g_g)
        o_g = jax.nn.sigmoid(o_g)
        c_new = f_g * c + i_g * g_g
        h_new = o_g * jnp.tanh(c_new)
        return (h_new, c_new), h_new

    S, B, _ = x.shape
    H = w_hh.shape[1]
    h0 = jnp.zeros((B, H), jnp.float32)
    c0 = jnp.zeros((B, H), jnp.float32)
    (h_n, c_n), out = jax.lax.scan(step, (h0, c0), x)
    return out, (h_n[None], c_n[None])


if __name__ == "__main__":
    # MyNetwork(inputs, outputs): forward builds x of shape (seq, 1, inputs)
    # and runs nn.LSTM(inputs, outputs) on it with zero initial state.
    SEQ, BATCH, INPUTS, HIDDEN = 8, 1, 16, 32

    key = jax.random.PRNGKey(0)
    kx, k1, k2, k3, k4 = jax.random.split(key, 5)

    # deterministic parameter init, PyTorch-style U(-1/sqrt(H), 1/sqrt(H))
    bound = 1.0 / (HIDDEN ** 0.5)
    w_ih = jax.random.uniform(k1, (4 * HIDDEN, INPUTS), jnp.float32, -bound, bound)
    w_hh = jax.random.uniform(k2, (4 * HIDDEN, HIDDEN), jnp.float32, -bound, bound)
    b_ih = jax.random.uniform(k3, (4 * HIDDEN,), jnp.float32, -bound, bound)
    b_hh = jax.random.uniform(k4, (4 * HIDDEN,), jnp.float32, -bound, bound)

    x = jax.random.normal(kx, (SEQ, BATCH, INPUTS), jnp.float32)

    # one-time parameter packing (hoisted out of the per-call path)
    wih_p, whh_p, b_p, H = prepare_lstm_params(w_ih, w_hh, b_ih, b_hh)
    wih_p, whh_p, b_p = jax.block_until_ready((wih_p, whh_p, b_p))

    out, (h_n, c_n) = lstm_forward(x, wih_p, whh_p, b_p, hidden=H)
    jax.block_until_ready((out, h_n, c_n))

    out_ref, (h_ref, c_ref) = lstm_reference(x, w_ih, w_hh, b_ih, b_hh)
    assert out.shape == (SEQ, BATCH, HIDDEN)
    assert h_n.shape == (1, BATCH, HIDDEN) and c_n.shape == (1, BATCH, HIDDEN)
    assert jnp.allclose(out, out_ref, atol=2e-5, rtol=2e-5)
    assert jnp.allclose(h_n, h_ref, atol=2e-5, rtol=2e-5)
    assert jnp.allclose(c_n, c_ref, atol=2e-5, rtol=2e-5)

    print("KERNEL_OK")
</pallas_src>

<mosaic_0001>
module attributes {stable_mosaic.version = 11 : i64} {
  func.func @lstm_kernel(%arg0: memref<8x16xf32, #tpu.memory_space<vmem>>, %arg1: memref<16x512xf32, #tpu.memory_space<vmem>>, %arg2: memref<128x512xf32, #tpu.memory_space<vmem>>, %arg3: memref<1x512xf32, #tpu.memory_space<vmem>>, %arg4: memref<8x128xf32, #tpu.memory_space<vmem>>, %arg5: memref<1x128xf32, #tpu.memory_space<vmem>>) attributes {dimension_semantics = [], scalar_prefetch = 0 : i64, scratch_operands = 0 : i64, tpu.core_type = #tpu.core_type<tc>} {
    %c0 = arith.constant 0 : index
    %c0_0 = arith.constant 0 : index
    %0 = vector.load %arg0[%c0, %c0_0] : memref<8x16xf32, #tpu.memory_space<vmem>>, vector<8x16xf32>
    %c0_1 = arith.constant 0 : index
    %c0_2 = arith.constant 0 : index
    %1 = vector.load %arg1[%c0_1, %c0_2] : memref<16x512xf32, #tpu.memory_space<vmem>>, vector<16x512xf32>
    %cst = arith.constant dense<0.000000e+00> : vector<8x512xf32>
    %2 = tpu.matmul %0, %1, %cst {dimension_numbers = #tpu.dot_dimension_numbers<[1], [0], [0], [1], [0, 0, 1, 1], [], []>} : vector<8x16xf32>, vector<16x512xf32>, vector<8x512xf32> -> vector<8x512xf32>
    %c0_3 = arith.constant 0 : index
    %c0_4 = arith.constant 0 : index
    %3 = vector.load %arg3[%c0_3, %c0_4] : memref<1x512xf32, #tpu.memory_space<vmem>>, vector<1x512xf32>
    %4 = vector.broadcast %3 : vector<1x512xf32> to vector<8x512xf32>
    %5 = arith.addf %2, %4 : vector<8x512xf32>
    %c0_5 = arith.constant 0 : index
    %c0_6 = arith.constant 0 : index
    %6 = vector.load %arg2[%c0_5, %c0_6] : memref<128x512xf32, #tpu.memory_space<vmem>>, vector<128x512xf32>
    %cst_7 = arith.constant 0.000000e+00 : f32
    %7 = vector.broadcast %cst_7 : f32 to vector<1x128xf32>
    %cst_8 = arith.constant 0.000000e+00 : f32
    %8 = vector.broadcast %cst_8 : f32 to vector<1x128xf32>
    %9 = vector.extract_strided_slice %5 {offsets = [0, 0], sizes = [1, 512], strides = [1, 1]} : vector<8x512xf32> to vector<1x512xf32>
    %cst_9 = arith.constant dense<0.000000e+00> : vector<1x512xf32>
    %10 = tpu.matmul %7, %6, %cst_9 {dimension_numbers = #tpu.dot_dimension_numbers<[1], [0], [0], [1], [0, 0, 1, 1], [], []>} : vector<1x128xf32>, vector<128x512xf32>, vector<1x512xf32> -> vector<1x512xf32>
    %11 = arith.addf %9, %10 : vector<1x512xf32>
    %12 = vector.extract_strided_slice %11 {offsets = [0, 0], sizes = [1, 384], strides = [1, 1]} : vector<1x512xf32> to vector<1x384xf32>
    %cst_10 = arith.constant 5.000000e-01 : f32
    %13 = vector.broadcast %cst_10 : f32 to vector<1x384xf32>
    %14 = arith.mulf %13, %12 : vector<1x384xf32>
    %15 = math.tanh %14 : vector<1x384xf32>
    %cst_11 = arith.constant 5.000000e-01 : f32
    %16 = vector.broadcast %cst_11 : f32 to vector<1x384xf32>
    %17 = arith.mulf %16, %15 : vector<1x384xf32>
    %cst_12 = arith.constant 5.000000e-01 : f32
    %18 = vector.broadcast %cst_12 : f32 to vector<1x384xf32>
    %19 = arith.addf %17, %18 : vector<1x384xf32>
    %20 = vector.extract_strided_slice %11 {offsets = [0, 384], sizes = [1, 128], strides = [1, 1]} : vector<1x512xf32> to vector<1x128xf32>
    %21 = math.tanh %20 : vector<1x128xf32>
    %22 = vector.extract_strided_slice %19 {offsets = [0, 0], sizes = [1, 128], strides = [1, 1]} : vector<1x384xf32> to vector<1x128xf32>
    %23 = vector.extract_strided_slice %19 {offsets = [0, 128], sizes = [1, 128], strides = [1, 1]} : vector<1x384xf32> to vector<1x128xf32>
    %24 = vector.extract_strided_slice %19 {offsets = [0, 256], sizes = [1, 128], strides = [1, 1]} : vector<1x384xf32> to vector<1x128xf32>
    %25 = arith.mulf %23, %8 : vector<1x128xf32>
    %26 = arith.mulf %22, %21 : vector<1x128xf32>
    %27 = arith.addf %25, %26 : vector<1x128xf32>
    %28 = math.tanh %27 : vector<1x128xf32>
    %29 = arith.mulf %24, %28 : vector<1x128xf32>
    %30 = vector.extract_strided_slice %5 {offsets = [1, 0], sizes = [1, 512], strides = [1, 1]} : vector<8x512xf32> to vector<1x512xf32>
    %cst_13 = arith.constant dense<0.000000e+00> : vector<1x512xf32>
    %31 = tpu.matmul %29, %6, %cst_13 {dimension_numbers = #tpu.dot_dimension_numbers<[1], [0], [0], [1], [0, 0, 1, 1], [], []>} : vector<1x128xf32>, vector<128x512xf32>, vector<1x512xf32> -> vector<1x512xf32>
    %32 = arith.addf %30, %31 : vector<1x512xf32>
    %33 = vector.extract_strided_slice %32 {offsets = [0, 0], sizes = [1, 384], strides = [1, 1]} : vector<1x512xf32> to vector<1x384xf32>
    %cst_14 = arith.constant 5.000000e-01 : f32
    %34 = vector.broadcast %cst_14 : f32 to vector<1x384xf32>
    %35 = arith.mulf %34, %33 : vector<1x384xf32>
    %36 = math.tanh %35 : vector<1x384xf32>
    %cst_15 = arith.constant 5.000000e-01 : f32
    %37 = vector.broadcast %cst_15 : f32 to vector<1x384xf32>
    %38 = arith.mulf %37, %36 : vector<1x384xf32>
    %cst_16 = arith.constant 5.000000e-01 : f32
    %39 = vector.broadcast %cst_16 : f32 to vector<1x384xf32>
    %40 = arith.addf %38, %39 : vector<1x384xf32>
    %41 = vector.extract_strided_slice %32 {offsets = [0, 384], sizes = [1, 128], strides = [1, 1]} : vector<1x512xf32> to vector<1x128xf32>
    %42 = math.tanh %41 : vector<1x128xf32>
    %43 = vector.extract_strided_slice %40 {offsets = [0, 0], sizes = [1, 128], strides = [1, 1]} : vector<1x384xf32> to vector<1x128xf32>
    %44 = vector.extract_strided_slice %40 {offsets = [0, 128], sizes = [1, 128], strides = [1, 1]} : vector<1x384xf32> to vector<1x128xf32>
    %45 = vector.extract_strided_slice %40 {offsets = [0, 256], sizes = [1, 128], strides = [1, 1]} : vector<1x384xf32> to vector<1x128xf32>
    %46 = arith.mulf %44, %27 : vector<1x128xf32>
    %47 = arith.mulf %43, %42 : vector<1x128xf32>
    %48 = arith.addf %46, %47 : vector<1x128xf32>
    %49 = math.tanh %48 : vector<1x128xf32>
    %50 = arith.mulf %45, %49 : vector<1x128xf32>
    %51 = vector.extract_strided_slice %5 {offsets = [2, 0], sizes = [1, 512], strides = [1, 1]} : vector<8x512xf32> to vector<1x512xf32>
    %cst_17 = arith.constant dense<0.000000e+00> : vector<1x512xf32>
    %52 = tpu.matmul %50, %6, %cst_17 {dimension_numbers = #tpu.dot_dimension_numbers<[1], [0], [0], [1], [0, 0, 1, 1], [], []>} : vector<1x128xf32>, vector<128x512xf32>, vector<1x512xf32> -> vector<1x512xf32>
    %53 = arith.addf %51, %52 : vector<1x512xf32>
    %54 = vector.extract_strided_slice %53 {offsets = [0, 0], sizes = [1, 384], strides = [1, 1]} : vector<1x512xf32> to vector<1x384xf32>
    %cst_18 = arith.constant 5.000000e-01 : f32
    %55 = vector.broadcast %cst_18 : f32 to vector<1x384xf32>
    %56 = arith.mulf %55, %54 : vector<1x384xf32>
    %57 = math.tanh %56 : vector<1x384xf32>
    %cst_19 = arith.constant 5.000000e-01 : f32
    %58 = vector.broadcast %cst_19 : f32 to vector<1x384xf32>
    %59 = arith.mulf %58, %57 : vector<1x384xf32>
    %cst_20 = arith.constant 5.000000e-01 : f32
    %60 = vector.broadcast %cst_20 : f32 to vector<1x384xf32>
    %61 = arith.addf %59, %60 : vector<1x384xf32>
    %62 = vector.extract_strided_slice %53 {offsets = [0, 384], sizes = [1, 128], strides = [1, 1]} : vector<1x512xf32> to vector<1x128xf32>
    %63 = math.tanh %62 : vector<1x128xf32>
    %64 = vector.extract_strided_slice %61 {offsets = [0, 0], sizes = [1, 128], strides = [1, 1]} : vector<1x384xf32> to vector<1x128xf32>
    %65 = vector.extract_strided_slice %61 {offsets = [0, 128], sizes = [1, 128], strides = [1, 1]} : vector<1x384xf32> to vector<1x128xf32>
    %66 = vector.extract_strided_slice %61 {offsets = [0, 256], sizes = [1, 128], strides = [1, 1]} : vector<1x384xf32> to vector<1x128xf32>
    %67 = arith.mulf %65, %48 : vector<1x128xf32>
    %68 = arith.mulf %64, %63 : vector<1x128xf32>
    %69 = arith.addf %67, %68 : vector<1x128xf32>
    %70 = math.tanh %69 : vector<1x128xf32>
    %71 = arith.mulf %66, %70 : vector<1x128xf32>
    %72 = vector.extract_strided_slice %5 {offsets = [3, 0], sizes = [1, 512], strides = [1, 1]} : vector<8x512xf32> to vector<1x512xf32>
    %cst_21 = arith.constant dense<0.000000e+00> : vector<1x512xf32>
    %73 = tpu.matmul %71, %6, %cst_21 {dimension_numbers = #tpu.dot_dimension_numbers<[1], [0], [0], [1], [0, 0, 1, 1], [], []>} : vector<1x128xf32>, vector<128x512xf32>, vector<1x512xf32> -> vector<1x512xf32>
    %74 = arith.addf %72, %73 : vector<1x512xf32>
    %75 = vector.extract_strided_slice %74 {offsets = [0, 0], sizes = [1, 384], strides = [1, 1]} : vector<1x512xf32> to vector<1x384xf32>
    %cst_22 = arith.constant 5.000000e-01 : f32
    %76 = vector.broadcast %cst_22 : f32 to vector<1x384xf32>
    %77 = arith.mulf %76, %75 : vector<1x384xf32>
    %78 = math.tanh %77 : vector<1x384xf32>
    %cst_23 = arith.constant 5.000000e-01 : f32
    %79 = vector.broadcast %cst_23 : f32 to vector<1x384xf32>
    %80 = arith.mulf %79, %78 : vector<1x384xf32>
    %cst_24 = arith.constant 5.000000e-01 : f32
    %81 = vector.broadcast %cst_24 : f32 to vector<1x384xf32>
    %82 = arith.addf %80, %81 : vector<1x384xf32>
    %83 = vector.extract_strided_slice %74 {offsets = [0, 384], sizes = [1, 128], strides = [1, 1]} : vector<1x512xf32> to vector<1x128xf32>
    %84 = math.tanh %83 : vector<1x128xf32>
    %85 = vector.extract_strided_slice %82 {offsets = [0, 0], sizes = [1, 128], strides = [1, 1]} : vector<1x384xf32> to vector<1x128xf32>
    %86 = vector.extract_strided_slice %82 {offsets = [0, 128], sizes = [1, 128], strides = [1, 1]} : vector<1x384xf32> to vector<1x128xf32>
    %87 = vector.extract_strided_slice %82 {offsets = [0, 256], sizes = [1, 128], strides = [1, 1]} : vector<1x384xf32> to vector<1x128xf32>
    %88 = arith.mulf %86, %69 : vector<1x128xf32>
    %89 = arith.mulf %85, %84 : vector<1x128xf32>
    %90 = arith.addf %88, %89 : vector<1x128xf32>
    %91 = math.tanh %90 : vector<1x128xf32>
    %92 = arith.mulf %87, %91 : vector<1x128xf32>
    %93 = vector.extract_strided_slice %5 {offsets = [4, 0], sizes = [1, 512], strides = [1, 1]} : vector<8x512xf32> to vector<1x512xf32>
    %cst_25 = arith.constant dense<0.000000e+00> : vector<1x512xf32>
    %94 = tpu.matmul %92, %6, %cst_25 {dimension_numbers = #tpu.dot_dimension_numbers<[1], [0], [0], [1], [0, 0, 1, 1], [], []>} : vector<1x128xf32>, vector<128x512xf32>, vector<1x512xf32> -> vector<1x512xf32>
    %95 = arith.addf %93, %94 : vector<1x512xf32>
    %96 = vector.extract_strided_slice %95 {offsets = [0, 0], sizes = [1, 384], strides = [1, 1]} : vector<1x512xf32> to vector<1x384xf32>
    %cst_26 = arith.constant 5.000000e-01 : f32
    %97 = vector.broadcast %cst_26 : f32 to vector<1x384xf32>
    %98 = arith.mulf %97, %96 : vector<1x384xf32>
    %99 = math.tanh %98 : vector<1x384xf32>
    %cst_27 = arith.constant 5.000000e-01 : f32
    %100 = vector.broadcast %cst_27 : f32 to vector<1x384xf32>
    %101 = arith.mulf %100, %99 : vector<1x384xf32>
    %cst_28 = arith.constant 5.000000e-01 : f32
    %102 = vector.broadcast %cst_28 : f32 to vector<1x384xf32>
    %103 = arith.addf %101, %102 : vector<1x384xf32>
    %104 = vector.extract_strided_slice %95 {offsets = [0, 384], sizes = [1, 128], strides = [1, 1]} : vector<1x512xf32> to vector<1x128xf32>
    %105 = math.tanh %104 : vector<1x128xf32>
    %106 = vector.extract_strided_slice %103 {offsets = [0, 0], sizes = [1, 128], strides = [1, 1]} : vector<1x384xf32> to vector<1x128xf32>
    %107 = vector.extract_strided_slice %103 {offsets = [0, 128], sizes = [1, 128], strides = [1, 1]} : vector<1x384xf32> to vector<1x128xf32>
    %108 = vector.extract_strided_slice %103 {offsets = [0, 256], sizes = [1, 128], strides = [1, 1]} : vector<1x384xf32> to vector<1x128xf32>
    %109 = arith.mulf %107, %90 : vector<1x128xf32>
    %110 = arith.mulf %106, %105 : vector<1x128xf32>
    %111 = arith.addf %109, %110 : vector<1x128xf32>
    %112 = math.tanh %111 : vector<1x128xf32>
    %113 = arith.mulf %108, %112 : vector<1x128xf32>
    %114 = vector.extract_strided_slice %5 {offsets = [5, 0], sizes = [1, 512], strides = [1, 1]} : vector<8x512xf32> to vector<1x512xf32>
    %cst_29 = arith.constant dense<0.000000e+00> : vector<1x512xf32>
    %115 = tpu.matmul %113, %6, %cst_29 {dimension_numbers = #tpu.dot_dimension_numbers<[1], [0], [0], [1], [0, 0, 1, 1], [], []>} : vector<1x128xf32>, vector<128x512xf32>, vector<1x512xf32> -> vector<1x512xf32>
    %116 = arith.addf %114, %115 : vector<1x512xf32>
    %117 = vector.extract_strided_slice %116 {offsets = [0, 0], sizes = [1, 384], strides = [1, 1]} : vector<1x512xf32> to vector<1x384xf32>
    %cst_30 = arith.constant 5.000000e-01 : f32
    %118 = vector.broadcast %cst_30 : f32 to vector<1x384xf32>
    %119 = arith.mulf %118, %117 : vector<1x384xf32>
    %120 = math.tanh %119 : vector<1x384xf32>
    %cst_31 = arith.constant 5.000000e-01 : f32
    %121 = vector.broadcast %cst_31 : f32 to vector<1x384xf32>
    %122 = arith.mulf %121, %120 : vector<1x384xf32>
    %cst_32 = arith.constant 5.000000e-01 : f32
    %123 = vector.broadcast %cst_32 : f32 to vector<1x384xf32>
    %124 = arith.addf %122, %123 : vector<1x384xf32>
    %125 = vector.extract_strided_slice %116 {offsets = [0, 384], sizes = [1, 128], strides = [1, 1]} : vector<1x512xf32> to vector<1x128xf32>
    %126 = math.tanh %125 : vector<1x128xf32>
    %127 = vector.extract_strided_slice %124 {offsets = [0, 0], sizes = [1, 128], strides = [1, 1]} : vector<1x384xf32> to vector<1x128xf32>
    %128 = vector.extract_strided_slice %124 {offsets = [0, 128], sizes = [1, 128], strides = [1, 1]} : vector<1x384xf32> to vector<1x128xf32>
    %129 = vector.extract_strided_slice %124 {offsets = [0, 256], sizes = [1, 128], strides = [1, 1]} : vector<1x384xf32> to vector<1x128xf32>
    %130 = arith.mulf %128, %111 : vector<1x128xf32>
    %131 = arith.mulf %127, %126 : vector<1x128xf32>
    %132 = arith.addf %130, %131 : vector<1x128xf32>
    %133 = math.tanh %132 : vector<1x128xf32>
    %134 = arith.mulf %129, %133 : vector<1x128xf32>
    %135 = vector.extract_strided_slice %5 {offsets = [6, 0], sizes = [1, 512], strides = [1, 1]} : vector<8x512xf32> to vector<1x512xf32>
    %cst_33 = arith.constant dense<0.000000e+00> : vector<1x512xf32>
    %136 = tpu.matmul %134, %6, %cst_33 {dimension_numbers = #tpu.dot_dimension_numbers<[1], [0], [0], [1], [0, 0, 1, 1], [], []>} : vector<1x128xf32>, vector<128x512xf32>, vector<1x512xf32> -> vector<1x512xf32>
    %137 = arith.addf %135, %136 : vector<1x512xf32>
    %138 = vector.extract_strided_slice %137 {offsets = [0, 0], sizes = [1, 384], strides = [1, 1]} : vector<1x512xf32> to vector<1x384xf32>
    %cst_34 = arith.constant 5.000000e-01 : f32
    %139 = vector.broadcast %cst_34 : f32 to vector<1x384xf32>
    %140 = arith.mulf %139, %138 : vector<1x384xf32>
    %141 = math.tanh %140 : vector<1x384xf32>
    %cst_35 = arith.constant 5.000000e-01 : f32
    %142 = vector.broadcast %cst_35 : f32 to vector<1x384xf32>
    %143 = arith.mulf %142, %141 : vector<1x384xf32>
    %cst_36 = arith.constant 5.000000e-01 : f32
    %144 = vector.broadcast %cst_36 : f32 to vector<1x384xf32>
    %145 = arith.addf %143, %144 : vector<1x384xf32>
    %146 = vector.extract_strided_slice %137 {offsets = [0, 384], sizes = [1, 128], strides = [1, 1]} : vector<1x512xf32> to vector<1x128xf32>
    %147 = math.tanh %146 : vector<1x128xf32>
    %148 = vector.extract_strided_slice %145 {offsets = [0, 0], sizes = [1, 128], strides = [1, 1]} : vector<1x384xf32> to vector<1x128xf32>
    %149 = vector.extract_strided_slice %145 {offsets = [0, 128], sizes = [1, 128], strides = [1, 1]} : vector<1x384xf32> to vector<1x128xf32>
    %150 = vector.extract_strided_slice %145 {offsets = [0, 256], sizes = [1, 128], strides = [1, 1]} : vector<1x384xf32> to vector<1x128xf32>
    %151 = arith.mulf %149, %132 : vector<1x128xf32>
    %152 = arith.mulf %148, %147 : vector<1x128xf32>
    %153 = arith.addf %151, %152 : vector<1x128xf32>
    %154 = math.tanh %153 : vector<1x128xf32>
    %155 = arith.mulf %150, %154 : vector<1x128xf32>
    %156 = vector.extract_strided_slice %5 {offsets = [7, 0], sizes = [1, 512], strides = [1, 1]} : vector<8x512xf32> to vector<1x512xf32>
    %cst_37 = arith.constant dense<0.000000e+00> : vector<1x512xf32>
    %157 = tpu.matmul %155, %6, %cst_37 {dimension_numbers = #tpu.dot_dimension_numbers<[1], [0], [0], [1], [0, 0, 1, 1], [], []>} : vector<1x128xf32>, vector<128x512xf32>, vector<1x512xf32> -> vector<1x512xf32>
    %158 = arith.addf %156, %157 : vector<1x512xf32>
    %159 = vector.extract_strided_slice %158 {offsets = [0, 0], sizes = [1, 384], strides = [1, 1]} : vector<1x512xf32> to vector<1x384xf32>
    %cst_38 = arith.constant 5.000000e-01 : f32
    %160 = vector.broadcast %cst_38 : f32 to vector<1x384xf32>
    %161 = arith.mulf %160, %159 : vector<1x384xf32>
    %162 = math.tanh %161 : vector<1x384xf32>
    %cst_39 = arith.constant 5.000000e-01 : f32
    %163 = vector.broadcast %cst_39 : f32 to vector<1x384xf32>
    %164 = arith.mulf %163, %162 : vector<1x384xf32>
    %cst_40 = arith.constant 5.000000e-01 : f32
    %165 = vector.broadcast %cst_40 : f32 to vector<1x384xf32>
    %166 = arith.addf %164, %165 : vector<1x384xf32>
    %167 = vector.extract_strided_slice %158 {offsets = [0, 384], sizes = [1, 128], strides = [1, 1]} : vector<1x512xf32> to vector<1x128xf32>
    %168 = math.tanh %167 : vector<1x128xf32>
    %169 = vector.extract_strided_slice %166 {offsets = [0, 0], sizes = [1, 128], strides = [1, 1]} : vector<1x384xf32> to vector<1x128xf32>
    %170 = vector.extract_strided_slice %166 {offsets = [0, 128], sizes = [1, 128], strides = [1, 1]} : vector<1x384xf32> to vector<1x128xf32>
    %171 = vector.extract_strided_slice %166 {offsets = [0, 256], sizes = [1, 128], strides = [1, 1]} : vector<1x384xf32> to vector<1x128xf32>
    %172 = arith.mulf %170, %153 : vector<1x128xf32>
    %173 = arith.mulf %169, %168 : vector<1x128xf32>
    %174 = arith.addf %172, %173 : vector<1x128xf32>
    %175 = math.tanh %174 : vector<1x128xf32>
    %176 = arith.mulf %171, %175 : vector<1x128xf32>
    %177 = tpu.concatenate %29, %50, %71, %92, %113, %134, %155, %176 in 0 : vector<1x128xf32>, vector<1x128xf32>, vector<1x128xf32>, vector<1x128xf32>, vector<1x128xf32>, vector<1x128xf32>, vector<1x128xf32>, vector<1x128xf32> -> vector<8x128xf32>
    %c0_41 = arith.constant 0 : index
    %c0_42 = arith.constant 0 : index
    %178 = vector.load %arg4[%c0_41, %c0_42] : memref<8x128xf32, #tpu.memory_space<vmem>>, vector<8x128xf32>
    tpu.vector_store %arg4[%c0_41, %c0_42], %177 {strides = array<i32>} : memref<8x128xf32, #tpu.memory_space<vmem>>, vector<8x128xf32>,
    %c0_43 = arith.constant 0 : index
    %c0_44 = arith.constant 0 : index
    %179 = vector.load %arg5[%c0_43, %c0_44] : memref<1x128xf32, #tpu.memory_space<vmem>>, vector<1x128xf32>
    tpu.vector_store %arg5[%c0_43, %c0_44], %174 {strides = array<i32>} : memref<1x128xf32, #tpu.memory_space<vmem>>, vector<1x128xf32>,
    return
  }
}

</mosaic_0001>

<llo_original>
// kernel: lstm_forward.1
$region0: #{lstm_forward.1}
  #allocation0 [shape = 'u32[]', space=smem, size = 0x4, offset = 0x4, fixed_abs, tag = 'smem constant byte address 0x4 - core index']
  #allocation1 [shape = 'u32[144,128]{1,0:T(1,128)}', space=vmem, size = 0x12000, scoped, tag = 'internal scratch']
  %s0 = inlined_call_operand.hbm [shape: f32[8,16], index: 0, kind: input, shape index: {}]
  %s1 = inlined_call_operand.hbm [shape: f32[16,512], index: 1, kind: input, shape index: {}]
  %s2 = inlined_call_operand.hbm [shape: f32[128,512], index: 2, kind: input, shape index: {}]
  %s3 = inlined_call_operand.vmem [shape: f32[1,512], index: 3, kind: input, shape index: {}]
  %s4 = inlined_call_operand.vmem [shape: f32[8,128], index: 4, kind: output, shape index: {0}]
  %s5 = inlined_call_operand.vmem [shape: f32[1,128], index: 5, kind: output, shape index: {1}]
  %6 = xla_tuple %s4, %s5
  %s7 = sld [smem:[#allocation0]]
  $region46: #{lstm_forward.1} parent=0
    _
  %s9 = ssub.s32 1, %s7
  %s10 = scalar_select 0, %s9, %s7
  $region1: #{lstm_forward.1} parent=0
    #allocation2 [shape = 'u8[4096]{0}', space=vmem, size = 0x1000, scoped, tag = 'input window, operand 0, single buffered']
    #allocation3 [shape = 's32[1]{0}', space=sflag, size = 0x4, scoped, tag = 'scoped memory for lstm_forward.1']
    #allocation4 [shape = 'u8[32768]{0}', space=vmem, size = 0x8000, scoped, tag = 'input window, operand 1, single buffered']
    #allocation5 [shape = 's32[1]{0}', space=sflag, size = 0x4, scoped, tag = 'scoped memory for lstm_forward.1']
    #allocation6 [shape = 'u8[262144]{0}', space=vmem, size = 0x40000, scoped, tag = 'input window, operand 2, single buffered']
    %11 = vsyncpa [#allocation3], 0
    %12 = vsyncpa [#allocation5], 0
    // Predicated region
    $region2: #{lstm_forward.1} parent=1 // pred_check
      _
    $region3: #{lstm_forward.1} parent=1 // pred_check_branch
      %14 = sbr.rel (0) target = $region5
    $region4: #{lstm_forward.1} parent=1 // pred_region
      %s16 = ssub.s32 128, 128
      %17 = vsyncadd [#allocation3], %s16
      %s19 = sshll.u32 [#allocation2], 4
      %s20 = int_to_ptr.vmem [resolvable:$true] %s19
      %22 = dma.hbm_to_vmem [thread:$0]  %s0, 128, %s20, [#allocation3]
    $region5: #{lstm_forward.1} parent=1 // pred_fallthru
      _
    // Predicated region
    $region6: #{lstm_forward.1} parent=1 // pred_check
      _
    $region7: #{lstm_forward.1} parent=1 // pred_check_branch
      %24 = sbr.rel (0) target = $region9
    $region8: #{lstm_forward.1} parent=1 // pred_region
      %s26 = ssub.s32 1024, 1024
      %27 = vsyncadd [#allocation5], %s26
      %s28 = sshll.u32 [#allocation4], 4
      %s29 = int_to_ptr.vmem [resolvable:$true] %s28
      %34 = dma.hbm_to_vmem [thread:$0]  %s1, 1024, %s29, [#allocation5], 512, 512, 32
    $region9: #{lstm_forward.1} parent=1 // pred_fallthru
      _
    // Predicated region
    $region10: #{lstm_forward.1} parent=1 // pred_check
      _
    $region11: #{lstm_forward.1} parent=1 // pred_check_branch
      %36 = sbr.rel (0) target = $region13
    $region12: #{lstm_forward.1} parent=1 // pred_region
      %s38 = ssub.s32 8192, 8192
      %39 = vsyncadd [#allocation5], %s38
      %s40 = sshll.u32 [#allocation6], 4
      %s41 = int_to_ptr.vmem [resolvable:$true] %s40
      %46 = dma.hbm_to_vmem [thread:$0]  %s2, 8192, %s41, [#allocation5], 512, 512, 32
    $region13: #{lstm_forward.1} parent=1 // pred_fallthru
      _
    // Predicated region
    $region14: #{lstm_forward.1} parent=1 // pred_check
      _
    $region15: #{lstm_forward.1} parent=1 // pred_check_branch
      %48 = sbr.rel (0) target = $region17
    $region16: #{lstm_forward.1} parent=1 // pred_region
      _
    $region17: #{lstm_forward.1} parent=1 // pred_fallthru
      _
    // Predicated region
    $region18: #{lstm_forward.1} parent=1 // pred_check
      _
    $region19: #{lstm_forward.1} parent=1 // pred_check_branch
      %50 = sbr.rel (0) target = $region21
    $region20: #{lstm_forward.1} parent=1 // pred_region
      %51 = dma.done [#allocation3], 128
    $region21: #{lstm_forward.1} parent=1 // pred_fallthru
      _
    // Predicated region
    $region22: #{lstm_forward.1} parent=1 // pred_check
      _
    $region23: #{lstm_forward.1} parent=1 // pred_check_branch
      %53 = sbr.rel (0) target = $region25
    $region24: #{lstm_forward.1} parent=1 // pred_region
      %54 = dma.done [#allocation5], 1024
    $region25: #{lstm_forward.1} parent=1 // pred_fallthru
      _
    // Predicated region
    $region26: #{lstm_forward.1} parent=1 // pred_check
      _
    $region27: #{lstm_forward.1} parent=1 // pred_check_branch
      %56 = sbr.rel (0) target = $region29
    $region28: #{lstm_forward.1} parent=1 // pred_region
      %57 = dma.done [#allocation5], 8192
    $region29: #{lstm_forward.1} parent=1 // pred_fallthru
      _
    %v58 = vld [vmem:[#allocation2] sm:$0xff]
    %v59 = vld [vmem:[#allocation4] sm:$0xff]
    %v60 = vld [vmem:[#allocation4 + $0x8] sm:$0xff]
    %v61 = vld [vmem:[#allocation4 + $0x10] sm:$0xff]
    %v62 = vld [vmem:[#allocation4 + $0x18] sm:$0xff]
    %v63 = vld [vmem:[#allocation4 + $0x20] sm:$0xff]
    %v64 = vld [vmem:[#allocation4 + $0x28] sm:$0xff]
    %v65 = vld [vmem:[#allocation4 + $0x30] sm:$0xff]
    %v66 = vld [vmem:[#allocation4 + $0x38] sm:$0xff]
    %v67 = vld [vmem:[%s3] sm:$0xf]
    %v69 = vlaneseq
    %v70 = vshrl.u32 %v69, 7
    %v71 = vsub.s32 0, %v70
    %v72 = vrot.slane %v67, %v71
    %v73 = vlaneseq
    %v74 = vshrl.u32 %v73, 7
    %v75 = vsub.s32 1, %v74
    %v76 = vrot.slane %v67, %v75
    %v77 = vlaneseq
    %v78 = vshrl.u32 %v77, 7
    %v79 = vsub.s32 2, %v78
    %v80 = vrot.slane %v67, %v79
    %v81 = vlaneseq
    %v82 = vshrl.u32 %v81, 7
    %v83 = vsub.s32 3, %v82
    %v84 = vrot.slane %v67, %v83
    %vm89 = vcmask 130048
    %v91 = vsel %vm89, %v58, 0
    %93 = vmatprep.subr.mxu0 0.0
    %94 = vmatpush1.msra.mxu0 0.0
    %95 = vmatprep.subr.mxu0 0.0
    %96 = vmatpush1.msra.mxu0 0.0
    %97 = vmatprep.subr.mxu0 0.0
    %98 = vmatpush1.msra.mxu0 0.0
    %99 = vmatprep.subr.mxu0 0.0
    %100 = vmatpush1.msra.mxu0 0.0
    %101 = vmatprep.subr.mxu0 0.0
    %102 = vmatpush1.msra.mxu0 0.0
    %103 = vmatprep.subr.mxu0 0.0
    %104 = vmatpush1.msra.mxu0 0.0
    %105 = vmatprep.subr.mxu0 0.0
    %106 = vmatpush1.msra.mxu0 0.0
    %107 = vmatprep.subr.mxu0 0.0
    %108 = vmatpush1.msra.mxu0 0.0
    %109 = vmatprep.subr.mxu0 0.0
    %110 = vmatpush1.msra.mxu0 0.0
    %111 = vmatprep.subr.mxu0 0.0
    %112 = vmatpush1.msra.mxu0 0.0
    %113 = vmatprep.subr.mxu0 0.0
    %114 = vmatpush1.msra.mxu0 0.0
    %115 = vmatprep.subr.mxu0 0.0
    %116 = vmatpush1.msra.mxu0 0.0
    %117 = vmatprep.subr.mxu0 0.0
    %118 = vmatpush1.msra.mxu0 0.0
    %119 = vmatprep.subr.mxu0 0.0
    %120 = vmatpush1.msra.mxu0 0.0
    %121 = vmatprep.subr.mxu0 %v64
    %122 = vmatpush1.msra.mxu0 %v63
    %123 = vmatprep.subr.mxu0 %v60
    %124 = vmatpush1.msra.mxu0 %v59
    %125 = vmatprep.subr.mxu0 0.0
    %126 = vmatpush2.msra.mxu0 0.0
    %127 = vmatprep.subr.mxu0 0.0
    %128 = vmatpush2.msra.mxu0 0.0
    %129 = vmatprep.subr.mxu0 0.0
    %130 = vmatpush2.msra.mxu0 0.0
    %131 = vmatprep.subr.mxu0 0.0
    %132 = vmatpush2.msra.mxu0 0.0
    %133 = vmatprep.subr.mxu0 0.0
    %134 = vmatpush2.msra.mxu0 0.0
    %135 = vmatprep.subr.mxu0 0.0
    %136 = vmatpush2.msra.mxu0 0.0
    %137 = vmatprep.subr.mxu0 0.0
    %138 = vmatpush2.msra.mxu0 0.0
    %139 = vmatprep.subr.mxu0 0.0
    %140 = vmatpush2.msra.mxu0 0.0
    %141 = vmatprep.subr.mxu0 0.0
    %142 = vmatpush2.msra.mxu0 0.0
    %143 = vmatprep.subr.mxu0 0.0
    %144 = vmatpush2.msra.mxu0 0.0
    %145 = vmatprep.subr.mxu0 0.0
    %146 = vmatpush2.msra.mxu0 0.0
    %147 = vmatprep.subr.mxu0 0.0
    %148 = vmatpush2.msra.mxu0 0.0
    %149 = vmatprep.subr.mxu0 0.0
    %150 = vmatpush2.msra.mxu0 0.0
    %151 = vmatprep.subr.mxu0 0.0
    %152 = vmatpush2.msra.mxu0 0.0
    %153 = vmatprep.subr.mxu0 0.0
    %154 = vmatpush2.msra.mxu0 0.0
    %155 = vmatprep.subr.mxu0 0.0
    %156 = vmatpush2.msra.mxu0 0.0
    %157 = vmatprep.mubr.f32.mxu0 0.0
    %158 = vmatmul.mubr.f32.gmra.mxu0 %v91
    %v159 = vpop.f32.mrf.mxu0
    %v160 = vadd.f32 %v72, %v159
    %v161 = vpop.f32.mrf.mxu0
    %v162 = vadd.f32 %v76, %v161
    %163 = vdwg.mxu0
    %164 = vmatprep.subr.mxu0 0.0
    %165 = vmatpush1.msra.mxu0 0.0
    %166 = vmatprep.subr.mxu0 0.0
    %167 = vmatpush1.msra.mxu0 0.0
    %168 = vmatprep.subr.mxu0 0.0
    %169 = vmatpush1.msra.mxu0 0.0
    %170 = vmatprep.subr.mxu0 0.0
    %171 = vmatpush1.msra.mxu0 0.0
    %172 = vmatprep.subr.mxu0 0.0
    %173 = vmatpush1.msra.mxu0 0.0
    %174 = vmatprep.subr.mxu0 0.0
    %175 = vmatpush1.msra.mxu0 0.0
    %176 = vmatprep.subr.mxu0 0.0
    %177 = vmatpush1.msra.mxu0 0.0
    %178 = vmatprep.subr.mxu0 0.0
    %179 = vmatpush1.msra.mxu0 0.0
    %180 = vmatprep.subr.mxu0 0.0
    %181 = vmatpush1.msra.mxu0 0.0
    %182 = vmatprep.subr.mxu0 0.0
    %183 = vmatpush1.msra.mxu0 0.0
    %184 = vmatprep.subr.mxu0 0.0
    %185 = vmatpush1.msra.mxu0 0.0
    %186 = vmatprep.subr.mxu0 0.0
    %187 = vmatpush1.msra.mxu0 0.0
    %188 = vmatprep.subr.mxu0 0.0
    %189 = vmatpush1.msra.mxu0 0.0
    %190 = vmatprep.subr.mxu0 0.0
    %191 = vmatpush1.msra.mxu0 0.0
    %192 = vmatprep.subr.mxu0 %v66
    %193 = vmatpush1.msra.mxu0 %v65
    %194 = vmatprep.subr.mxu0 %v62
    %195 = vmatpush1.msra.mxu0 %v61
    %196 = vmatprep.subr.mxu0 0.0
    %197 = vmatpush2.msra.mxu0 0.0
    %198 = vmatprep.subr.mxu0 0.0
    %199 = vmatpush2.msra.mxu0 0.0
    %200 = vmatprep.subr.mxu0 0.0
    %201 = vmatpush2.msra.mxu0 0.0
    %202 = vmatprep.subr.mxu0 0.0
    %203 = vmatpush2.msra.mxu0 0.0
    %204 = vmatprep.subr.mxu0 0.0
    %205 = vmatpush2.msra.mxu0 0.0
    %206 = vmatprep.subr.mxu0 0.0
    %207 = vmatpush2.msra.mxu0 0.0
    %208 = vmatprep.subr.mxu0 0.0
    %209 = vmatpush2.msra.mxu0 0.0
    %210 = vmatprep.subr.mxu0 0.0
    %211 = vmatpush2.msra.mxu0 0.0
    %212 = vmatprep.subr.mxu0 0.0
    %213 = vmatpush2.msra.mxu0 0.0
    %214 = vmatprep.subr.mxu0 0.0
    %215 = vmatpush2.msra.mxu0 0.0
    %216 = vmatprep.subr.mxu0 0.0
    %217 = vmatpush2.msra.mxu0 0.0
    %218 = vmatprep.subr.mxu0 0.0
    %219 = vmatpush2.msra.mxu0 0.0
    %220 = vmatprep.subr.mxu0 0.0
    %221 = vmatpush2.msra.mxu0 0.0
    %222 = vmatprep.subr.mxu0 0.0
    %223 = vmatpush2.msra.mxu0 0.0
    %224 = vmatprep.subr.mxu0 0.0
    %225 = vmatpush2.msra.mxu0 0.0
    %226 = vmatprep.subr.mxu0 0.0
    %227 = vmatpush2.msra.mxu0 0.0
    %228 = vmatprep.mubr.f32.mxu0 0.0
    %229 = vmatmul.mubr.f32.gmra.mxu0 %v91
    %v230 = vpop.f32.mrf.mxu0
    %v231 = vadd.f32 %v80, %v230
    %v232 = vpop.f32.mrf.mxu0
    %v233 = vadd.f32 %v84, %v232
    %234 = vdwg.mxu0
    %v235 = vld [vmem:[#allocation6] sm:$0xff]
    %v236 = vld [vmem:[#allocation6 + $0x8] sm:$0xff]
    %v237 = vld [vmem:[#allocation6 + $0x10] sm:$0xff]
    %v238 = vld [vmem:[#allocation6 + $0x18] sm:$0xff]
    %v239 = vld [vmem:[#allocation6 + $0x20] sm:$0xff]
    %v240 = vld [vmem:[#allocation6 + $0x28] sm:$0xff]
    %v241 = vld [vmem:[#allocation6 + $0x30] sm:$0xff]
    %v242 = vld [vmem:[#allocation6 + $0x38] sm:$0xff]
    %v243 = vld [vmem:[#allocation6 + $0x40] sm:$0xff]
    %v244 = vld [vmem:[#allocation6 + $0x48] sm:$0xff]
    %v245 = vld [vmem:[#allocation6 + $0x50] sm:$0xff]
    %v246 = vld [vmem:[#allocation6 + $0x58] sm:$0xff]
    %v247 = vld [vmem:[#allocation6 + $0x60] sm:$0xff]
    %v248 = vld [vmem:[#allocation6 + $0x68] sm:$0xff]
    %v249 = vld [vmem:[#allocation6 + $0x70] sm:$0xff]
    %v250 = vld [vmem:[#allocation6 + $0x78] sm:$0xff]
    %v251 = vld [vmem:[#allocation6 + $0x80] sm:$0xff]
    %v252 = vld [vmem:[#allocation6 + $0x88] sm:$0xff]
    %v253 = vld [vmem:[#allocation6 + $0x90] sm:$0xff]
    %v254 = vld [vmem:[#allocation6 + $0x98] sm:$0xff]
    %v255 = vld [vmem:[#allocation6 + $0xa0] sm:$0xff]
    %v256 = vld [vmem:[#allocation6 + $0xa8] sm:$0xff]
    %v257 = vld [vmem:[#allocation6 + $0xb0] sm:$0xff]
    %v258 = vld [vmem:[#allocation6 + $0xb8] sm:$0xff]
    %v259 = vld [vmem:[#allocation6 + $0xc0] sm:$0xff]
    %v260 = vld [vmem:[#allocation6 + $0xc8] sm:$0xff]
    %v261 = vld [vmem:[#allocation6 + $0xd0] sm:$0xff]
    %v262 = vld [vmem:[#allocation6 + $0xd8] sm:$0xff]
    %v263 = vld [vmem:[#allocation6 + $0xe0] sm:$0xff]
    %v264 = vld [vmem:[#allocation6 + $0xe8] sm:$0xff]
    %v265 = vld [vmem:[#allocation6 + $0xf0] sm:$0xff]
    %v266 = vld [vmem:[#allocation6 + $0xf8] sm:$0xff]
    %v267 = vld [vmem:[#allocation6 + $0x100] sm:$0xff]
    %v268 = vld [vmem:[#allocation6 + $0x108] sm:$0xff]
    %v269 = vld [vmem:[#allocation6 + $0x110] sm:$0xff]
    %v270 = vld [vmem:[#allocation6 + $0x118] sm:$0xff]
    %v271 = vld [vmem:[#allocation6 + $0x120] sm:$0xff]
    %v272 = vld [vmem:[#allocation6 + $0x128] sm:$0xff]
    %v273 = vld [vmem:[#allocation6 + $0x130] sm:$0xff]
    %v274 = vld [vmem:[#allocation6 + $0x138] sm:$0xff]
    %v275 = vld [vmem:[#allocation6 + $0x140] sm:$0xff]
    %v276 = vld [vmem:[#allocation6 + $0x148] sm:$0xff]
    %v277 = vld [vmem:[#allocation6 + $0x150] sm:$0xff]
    %v278 = vld [vmem:[#allocation6 + $0x158] sm:$0xff]
    %v279 = vld [vmem:[#allocation6 + $0x160] sm:$0xff]
    %v280 = vld [vmem:[#allocation6 + $0x168] sm:$0xff]
    %v281 = vld [vmem:[#allocation6 + $0x170] sm:$0xff]
    %v282 = vld [vmem:[#allocation6 + $0x178] sm:$0xff]
    %v283 = vld [vmem:[#allocation6 + $0x180] sm:$0xff]
    %v284 = vld [vmem:[#allocation6 + $0x188] sm:$0xff]
    %v285 = vld [vmem:[#allocation6 + $0x190] sm:$0xff]
    %v286 = vld [vmem:[#allocation6 + $0x198] sm:$0xff]
    %v287 = vld [vmem:[#allocation6 + $0x1a0] sm:$0xff]
    %v288 = vld [vmem:[#allocation6 + $0x1a8] sm:$0xff]
    %v289 = vld [vmem:[#allocation6 + $0x1b0] sm:$0xff]
    %v290 = vld [vmem:[#allocation6 + $0x1b8] sm:$0xff]
    %v291 = vld [vmem:[#allocation6 + $0x1c0] sm:$0xff]
    %v292 = vld [vmem:[#allocation6 + $0x1c8] sm:$0xff]
    %v293 = vld [vmem:[#allocation6 + $0x1d0] sm:$0xff]
    %v294 = vld [vmem:[#allocation6 + $0x1d8] sm:$0xff]
    %v295 = vld [vmem:[#allocation6 + $0x1e0] sm:$0xff]
    %v296 = vld [vmem:[#allocation6 + $0x1e8] sm:$0xff]
    %v297 = vld [vmem:[#allocation6 + $0x1f0] sm:$0xff]
    %v298 = vld [vmem:[#allocation6 + $0x1f8] sm:$0xff]
    %299 = vmatprep.subr.mxu0 %v296
    %300 = vmatpush1.msra.mxu0 %v295
    %301 = vmatprep.subr.mxu0 %v292
    %302 = vmatpush1.msra.mxu0 %v291
    %303 = vmatprep.subr.mxu0 %v288
    %304 = vmatpush1.msra.mxu0 %v287
    %305 = vmatprep.subr.mxu0 %v284
    %306 = vmatpush1.msra.mxu0 %v283
    %307 = vmatprep.subr.mxu0 %v280
    %308 = vmatpush1.msra.mxu0 %v279
    %309 = vmatprep.subr.mxu0 %v276
    %310 = vmatpush1.msra.mxu0 %v275
    %311 = vmatprep.subr.mxu0 %v272
    %312 = vmatpush1.msra.mxu0 %v271
    %313 = vmatprep.subr.mxu0 %v268
    %314 = vmatpush1.msra.mxu0 %v267
    %315 = vmatprep.subr.mxu0 %v264
    %316 = vmatpush1.msra.mxu0 %v263
    %317 = vmatprep.subr.mxu0 %v260
    %318 = vmatpush1.msra.mxu0 %v259
    %319 = vmatprep.subr.mxu0 %v256
    %320 = vmatpush1.msra.mxu0 %v255
    %321 = vmatprep.subr.mxu0 %v252
    %322 = vmatpush1.msra.mxu0 %v251
    %323 = vmatprep.subr.mxu0 %v248
    %324 = vmatpush1.msra.mxu0 %v247
    %325 = vmatprep.subr.mxu0 %v244
    %326 = vmatpush1.msra.mxu0 %v243
    %327 = vmatprep.subr.mxu0 %v240
    %328 = vmatpush1.msra.mxu0 %v239
    %329 = vmatprep.subr.mxu0 %v236
    %330 = vmatpush1.msra.mxu0 %v235
    %331 = vmatprep.subr.mxu0 0.0
    %332 = vmatpush2.msra.mxu0 0.0
    %333 = vmatprep.subr.mxu0 0.0
    %334 = vmatpush2.msra.mxu0 0.0
    %335 = vmatprep.subr.mxu0 0.0
    %336 = vmatpush2.msra.mxu0 0.0
    %337 = vmatprep.subr.mxu0 0.0
    %338 = vmatpush2.msra.mxu0 0.0
    %339 = vmatprep.subr.mxu0 0.0
    %340 = vmatpush2.msra.mxu0 0.0
    %341 = vmatprep.subr.mxu0 0.0
    %342 = vmatpush2.msra.mxu0 0.0
    %343 = vmatprep.subr.mxu0 0.0
    %344 = vmatpush2.msra.mxu0 0.0
    %345 = vmatprep.subr.mxu0 0.0
    %346 = vmatpush2.msra.mxu0 0.0
    %347 = vmatprep.subr.mxu0 0.0
    %348 = vmatpush2.msra.mxu0 0.0
    %349 = vmatprep.subr.mxu0 0.0
    %350 = vmatpush2.msra.mxu0 0.0
    %351 = vmatprep.subr.mxu0 0.0
    %352 = vmatpush2.msra.mxu0 0.0
    %353 = vmatprep.subr.mxu0 0.0
    %354 = vmatpush2.msra.mxu0 0.0
    %355 = vmatprep.subr.mxu0 0.0
    %356 = vmatpush2.msra.mxu0 0.0
    %357 = vmatprep.subr.mxu0 0.0
    %358 = vmatpush2.msra.mxu0 0.0
    %359 = vmatprep.subr.mxu0 0.0
    %360 = vmatpush2.msra.mxu0 0.0
    %361 = vmatprep.subr.mxu0 0.0
    %362 = vmatpush2.msra.mxu0 0.0
    %363 = vmatprep.mubr.f32.mxu0 0.0
    %364 = vmatmul.mubr.f32.gmra.mxu0 0.0
    %v365 = vpop.f32.mrf.mxu0
    %v366 = vadd.f32 0.0, %v365
    %v367 = vpop.f32.mrf.mxu0
    %v368 = vadd.f32 0.0, %v367
    %369 = vdwg.mxu0
    %370 = vmatprep.subr.mxu0 %v298
    %371 = vmatpush1.msra.mxu0 %v297
    %372 = vmatprep.subr.mxu0 %v294
    %373 = vmatpush1.msra.mxu0 %v293
    %374 = vmatprep.subr.mxu0 %v290
    %375 = vmatpush1.msra.mxu0 %v289
    %376 = vmatprep.subr.mxu0 %v286
    %377 = vmatpush1.msra.mxu0 %v285
    %378 = vmatprep.subr.mxu0 %v282
    %379 = vmatpush1.msra.mxu0 %v281
    %380 = vmatprep.subr.mxu0 %v278
    %381 = vmatpush1.msra.mxu0 %v277
    %382 = vmatprep.subr.mxu0 %v274
    %383 = vmatpush1.msra.mxu0 %v273
    %384 = vmatprep.subr.mxu0 %v270
    %385 = vmatpush1.msra.mxu0 %v269
    %386 = vmatprep.subr.mxu0 %v266
    %387 = vmatpush1.msra.mxu0 %v265
    %388 = vmatprep.subr.mxu0 %v262
    %389 = vmatpush1.msra.mxu0 %v261
    %390 = vmatprep.subr.mxu0 %v258
    %391 = vmatpush1.msra.mxu0 %v257
    %392 = vmatprep.subr.mxu0 %v254
    %393 = vmatpush1.msra.mxu0 %v253
    %394 = vmatprep.subr.mxu0 %v250
    %395 = vmatpush1.msra.mxu0 %v249
    %396 = vmatprep.subr.mxu0 %v246
    %397 = vmatpush1.msra.mxu0 %v245
    %398 = vmatprep.subr.mxu0 %v242
    %399 = vmatpush1.msra.mxu0 %v241
    %400 = vmatprep.subr.mxu0 %v238
    %401 = vmatpush1.msra.mxu0 %v237
    %402 = vmatprep.subr.mxu0 0.0
    %403 = vmatpush2.msra.mxu0 0.0
    %404 = vmatprep.subr.mxu0 0.0
    %405 = vmatpush2.msra.mxu0 0.0
    %406 = vmatprep.subr.mxu0 0.0
    %407 = vmatpush2.msra.mxu0 0.0
    %408 = vmatprep.subr.mxu0 0.0
    %409 = vmatpush2.msra.mxu0 0.0
    %410 = vmatprep.subr.mxu0 0.0
    %411 = vmatpush2.msra.mxu0 0.0
    %412 = vmatprep.subr.mxu0 0.0
    %413 = vmatpush2.msra.mxu0 0.0
    %414 = vmatprep.subr.mxu0 0.0
    %415 = vmatpush2.msra.mxu0 0.0
    %416 = vmatprep.subr.mxu0 0.0
    %417 = vmatpush2.msra.mxu0 0.0
    %418 = vmatprep.subr.mxu0 0.0
    %419 = vmatpush2.msra.mxu0 0.0
    %420 = vmatprep.subr.mxu0 0.0
    %421 = vmatpush2.msra.mxu0 0.0
    %422 = vmatprep.subr.mxu0 0.0
    %423 = vmatpush2.msra.mxu0 0.0
    %424 = vmatprep.subr.mxu0 0.0
    %425 = vmatpush2.msra.mxu0 0.0
    %426 = vmatprep.subr.mxu0 0.0
    %427 = vmatpush2.msra.mxu0 0.0
    %428 = vmatprep.subr.mxu0 0.0
    %429 = vmatpush2.msra.mxu0 0.0
    %430 = vmatprep.subr.mxu0 0.0
    %431 = vmatpush2.msra.mxu0 0.0
    %432 = vmatprep.subr.mxu0 0.0
    %433 = vmatpush2.msra.mxu0 0.0
    %434 = vmatprep.mubr.f32.mxu0 0.0
    %435 = vmatmul.mubr.f32.gmra.mxu0 0.0
    %v436 = vpop.f32.mrf.mxu0
    %v437 = vadd.f32 0.0, %v436
    %v438 = vpop.f32.mrf.mxu0
    %v439 = vadd.f32 0.0, %v438
    %440 = vdwg.mxu0
    %v441 = vadd.f32 %v160, %v366
    %v442 = vadd.f32 %v162, %v368
    %v443 = vadd.f32 %v231, %v437
    %v444 = vadd.f32 %v233, %v439
    %v445 = vmul.f32 %v441, 0.5
    %v446 = vmul.f32 %v442, 0.5
    %v447 = vmul.f32 %v443, 0.5
    %v448 = vtanh.pop %v445
    %v449 = vtanh.pop %v446
    %v450 = vtanh.pop %v447
    %v451 = vmul.f32 %v448, 0.5
    %v452 = vmul.f32 %v449, 0.5
    %v453 = vmul.f32 %v450, 0.5
    %v454 = vadd.f32 %v451, 0.5
    %v455 = vadd.f32 %v452, 0.5
    %v456 = vadd.f32 %v453, 0.5
    %v457 = vtanh.pop %v444
    %v458 = vmul.f32 %v455, 0.0
    %v459 = vmul.f32 %v454, %v457
    %v460 = vadd.f32 %v458, %v459
    %v461 = vtanh.pop %v460
    %v462 = vmul.f32 %v456, %v461
    %463 = vmatprep.subr.mxu0 %v296
    %464 = vmatpush1.msra.mxu0 %v295
    %465 = vmatprep.subr.mxu0 %v292
    %466 = vmatpush1.msra.mxu0 %v291
    %467 = vmatprep.subr.mxu0 %v288
    %468 = vmatpush1.msra.mxu0 %v287
    %469 = vmatprep.subr.mxu0 %v284
    %470 = vmatpush1.msra.mxu0 %v283
    %471 = vmatprep.subr.mxu0 %v280
    %472 = vmatpush1.msra.mxu0 %v279
    %473 = vmatprep.subr.mxu0 %v276
    %474 = vmatpush1.msra.mxu0 %v275
    %475 = vmatprep.subr.mxu0 %v272
    %476 = vmatpush1.msra.mxu0 %v271
    %477 = vmatprep.subr.mxu0 %v268
    %478 = vmatpush1.msra.mxu0 %v267
    %479 = vmatprep.subr.mxu0 %v264
    %480 = vmatpush1.msra.mxu0 %v263
    %481 = vmatprep.subr.mxu0 %v260
    %482 = vmatpush1.msra.mxu0 %v259
    %483 = vmatprep.subr.mxu0 %v256
    %484 = vmatpush1.msra.mxu0 %v255
    %485 = vmatprep.subr.mxu0 %v252
    %486 = vmatpush1.msra.mxu0 %v251
    %487 = vmatprep.subr.mxu0 %v248
    %488 = vmatpush1.msra.mxu0 %v247
    %489 = vmatprep.subr.mxu0 %v244
    %490 = vmatpush1.msra.mxu0 %v243
    %491 = vmatprep.subr.mxu0 %v240
    %492 = vmatpush1.msra.mxu0 %v239
    %493 = vmatprep.subr.mxu0 %v236
    %494 = vmatpush1.msra.mxu0 %v235
    %495 = vmatprep.subr.mxu0 0.0
    %496 = vmatpush2.msra.mxu0 0.0
    %497 = vmatprep.subr.mxu0 0.0
    %498 = vmatpush2.msra.mxu0 0.0
    %499 = vmatprep.subr.mxu0 0.0
    %500 = vmatpush2.msra.mxu0 0.0
    %501 = vmatprep.subr.mxu0 0.0
    %502 = vmatpush2.msra.mxu0 0.0
    %503 = vmatprep.subr.mxu0 0.0
    %504 = vmatpush2.msra.mxu0 0.0
    %505 = vmatprep.subr.mxu0 0.0
    %506 = vmatpush2.msra.mxu0 0.0
    %507 = vmatprep.subr.mxu0 0.0
    %508 = vmatpush2.msra.mxu0 0.0
    %509 = vmatprep.subr.mxu0 0.0
    %510 = vmatpush2.msra.mxu0 0.0
    %511 = vmatprep.subr.mxu0 0.0
    %512 = vmatpush2.msra.mxu0 0.0
    %513 = vmatprep.subr.mxu0 0.0
    %514 = vmatpush2.msra.mxu0 0.0
    %515 = vmatprep.subr.mxu0 0.0
    %516 = vmatpush2.msra.mxu0 0.0
    %517 = vmatprep.subr.mxu0 0.0
    %518 = vmatpush2.msra.mxu0 0.0
    %519 = vmatprep.subr.mxu0 0.0
    %520 = vmatpush2.msra.mxu0 0.0
    %521 = vmatprep.subr.mxu0 0.0
    %522 = vmatpush2.msra.mxu0 0.0
    %523 = vmatprep.subr.mxu0 0.0
    %524 = vmatpush2.msra.mxu0 0.0
    %525 = vmatprep.subr.mxu0 0.0
    %526 = vmatpush2.msra.mxu0 0.0
    %527 = vmatprep.mubr.f32.mxu0 0.0
    %528 = vmatmul.mubr.f32.gmra.mxu0 %v462
    %v529 = vpop.f32.mrf.mxu0
    %v530 = vadd.f32 0.0, %v529
    %v531 = vpop.f32.mrf.mxu0
    %v532 = vadd.f32 0.0, %v531
    %533 = vdwg.mxu0
    %534 = vmatprep.subr.mxu0 %v298
    %535 = vmatpush1.msra.mxu0 %v297
    %536 = vmatprep.subr.mxu0 %v294
    %537 = vmatpush1.msra.mxu0 %v293
    %538 = vmatprep.subr.mxu0 %v290
    %539 = vmatpush1.msra.mxu0 %v289
    %540 = vmatprep.subr.mxu0 %v286
    %541 = vmatpush1.msra.mxu0 %v285
    %542 = vmatprep.subr.mxu0 %v282
    %543 = vmatpush1.msra.mxu0 %v281
    %544 = vmatprep.subr.mxu0 %v278
    %545 = vmatpush1.msra.mxu0 %v277
    %546 = vmatprep.subr.mxu0 %v274
    %547 = vmatpush1.msra.mxu0 %v273
    %548 = vmatprep.subr.mxu0 %v270
    %549 = vmatpush1.msra.mxu0 %v269
    %550 = vmatprep.subr.mxu0 %v266
    %551 = vmatpush1.msra.mxu0 %v265
    %552 = vmatprep.subr.mxu0 %v262
    %553 = vmatpush1.msra.mxu0 %v261
    %554 = vmatprep.subr.mxu0 %v258
    %555 = vmatpush1.msra.mxu0 %v257
    %556 = vmatprep.subr.mxu0 %v254
    %557 = vmatpush1.msra.mxu0 %v253
    %558 = vmatprep.subr.mxu0 %v250
    %559 = vmatpush1.msra.mxu0 %v249
    %560 = vmatprep.subr.mxu0 %v246
    %561 = vmatpush1.msra.mxu0 %v245
    %562 = vmatprep.subr.mxu0 %v242
    %563 = vmatpush1.msra.mxu0 %v241
    %564 = vmatprep.subr.mxu0 %v238
    %565 = vmatpush1.msra.mxu0 %v237
    %566 = vmatprep.subr.mxu0 0.0
    %567 = vmatpush2.msra.mxu0 0.0
    %568 = vmatprep.subr.mxu0 0.0
    %569 = vmatpush2.msra.mxu0 0.0
    %570 = vmatprep.subr.mxu0 0.0
    %571 = vmatpush2.msra.mxu0 0.0
    %572 = vmatprep.subr.mxu0 0.0
    %573 = vmatpush2.msra.mxu0 0.0
    %574 = vmatprep.subr.mxu0 0.0
    %575 = vmatpush2.msra.mxu0 0.0
    %576 = vmatprep.subr.mxu0 0.0
    %577 = vmatpush2.msra.mxu0 0.0
    %578 = vmatprep.subr.mxu0 0.0
    %579 = vmatpush2.msra.mxu0 0.0
    %580 = vmatprep.subr.mxu0 0.0
    %581 = vmatpush2.msra.mxu0 0.0
    %582 = vmatprep.subr.mxu0 0.0
    %583 = vmatpush2.msra.mxu0 0.0
    %584 = vmatprep.subr.mxu0 0.0
    %585 = vmatpush2.msra.mxu0 0.0
    %586 = vmatprep.subr.mxu0 0.0
    %587 = vmatpush2.msra.mxu0 0.0
    %588 = vmatprep.subr.mxu0 0.0
    %589 = vmatpush2.msra.mxu0 0.0
    %590 = vmatprep.subr.mxu0 0.0
    %591 = vmatpush2.msra.mxu0 0.0
    %592 = vmatprep.subr.mxu0 0.0
    %593 = vmatpush2.msra.mxu0 0.0
    %594 = vmatprep.subr.mxu0 0.0
    %595 = vmatpush2.msra.mxu0 0.0
    %596 = vmatprep.subr.mxu0 0.0
    %597 = vmatpush2.msra.mxu0 0.0
    %598 = vmatprep.mubr.f32.mxu0 0.0
    %599 = vmatmul.mubr.f32.gmra.mxu0 %v462
    %v600 = vpop.f32.mrf.mxu0
    %v601 = vadd.f32 0.0, %v600
    %v602 = vpop.f32.mrf.mxu0
    %v603 = vadd.f32 0.0, %v602
    %604 = vdwg.mxu0
    %v609 = vrot.slane %v530, 7
    %v610 = vrot.slane %v532, 7
    %v611 = vrot.slane %v601, 7
    %v612 = vrot.slane %v603, 7
    %v617 = vadd.f32 %v160, %v609
    %v618 = vadd.f32 %v162, %v610
    %v619 = vadd.f32 %v231, %v611
    %v620 = vadd.f32 %v233, %v612
    %v621 = vmul.f32 %v617, 0.5
    %v622 = vmul.f32 %v618, 0.5
    %v623 = vmul.f32 %v619, 0.5
    %v624 = vtanh.pop %v621
    %v625 = vtanh.pop %v622
    %v626 = vtanh.pop %v623
    %v627 = vmul.f32 %v624, 0.5
    %v628 = vmul.f32 %v625, 0.5
    %v629 = vmul.f32 %v626, 0.5
    %v630 = vadd.f32 %v627, 0.5
    %v631 = vadd.f32 %v628, 0.5
    %v632 = vadd.f32 %v629, 0.5
    %v633 = vtanh.pop %v620
    %v635 = vrot.slane %v460, 7
    %v637 = vmul.f32 %v631, %v635
    %v638 = vmul.f32 %v630, %v633
    %v639 = vadd.f32 %v637, %v638
    %v640 = vtanh.pop %v639
    %v641 = vmul.f32 %v632, %v640
    %v643 = vrot.slane %v641, 1
    %645 = vmatprep.subr.mxu0 %v296
    %646 = vmatpush1.msra.mxu0 %v295
    %647 = vmatprep.subr.mxu0 %v292
    %648 = vmatpush1.msra.mxu0 %v291
    %649 = vmatprep.subr.mxu0 %v288
    %650 = vmatpush1.msra.mxu0 %v287
    %651 = vmatprep.subr.mxu0 %v284
    %652 = vmatpush1.msra.mxu0 %v283
    %653 = vmatprep.subr.mxu0 %v280
    %654 = vmatpush1.msra.mxu0 %v279
    %655 = vmatprep.subr.mxu0 %v276
    %656 = vmatpush1.msra.mxu0 %v275
    %657 = vmatprep.subr.mxu0 %v272
    %658 = vmatpush1.msra.mxu0 %v271
    %659 = vmatprep.subr.mxu0 %v268
    %660 = vmatpush1.msra.mxu0 %v267
    %661 = vmatprep.subr.mxu0 %v264
    %662 = vmatpush1.msra.mxu0 %v263
    %663 = vmatprep.subr.mxu0 %v260
    %664 = vmatpush1.msra.mxu0 %v259
    %665 = vmatprep.subr.mxu0 %v256
    %666 = vmatpush1.msra.mxu0 %v255
    %667 = vmatprep.subr.mxu0 %v252
    %668 = vmatpush1.msra.mxu0 %v251
    %669 = vmatprep.subr.mxu0 %v248
    %670 = vmatpush1.msra.mxu0 %v247
    %671 = vmatprep.subr.mxu0 %v244
    %672 = vmatpush1.msra.mxu0 %v243
    %673 = vmatprep.subr.mxu0 %v240
    %674 = vmatpush1.msra.mxu0 %v239
    %675 = vmatprep.subr.mxu0 %v236
    %676 = vmatpush1.msra.mxu0 %v235
    %677 = vmatprep.subr.mxu0 0.0
    %678 = vmatpush2.msra.mxu0 0.0
    %679 = vmatprep.subr.mxu0 0.0
    %680 = vmatpush2.msra.mxu0 0.0
    %681 = vmatprep.subr.mxu0 0.0
    %682 = vmatpush2.msra.mxu0 0.0
    %683 = vmatprep.subr.mxu0 0.0
    %684 = vmatpush2.msra.mxu0 0.0
    %685 = vmatprep.subr.mxu0 0.0
    %686 = vmatpush2.msra.mxu0 0.0
    %687 = vmatprep.subr.mxu0 0.0
    %688 = vmatpush2.msra.mxu0 0.0
    %689 = vmatprep.subr.mxu0 0.0
    %690 = vmatpush2.msra.mxu0 0.0
    %691 = vmatprep.subr.mxu0 0.0
    %692 = vmatpush2.msra.mxu0 0.0
    %693 = vmatprep.subr.mxu0 0.0
    %694 = vmatpush2.msra.mxu0 0.0
    %695 = vmatprep.subr.mxu0 0.0
    %696 = vmatpush2.msra.mxu0 0.0
    %697 = vmatprep.subr.mxu0 0.0
    %698 = vmatpush2.msra.mxu0 0.0
    %699 = vmatprep.subr.mxu0 0.0
    %700 = vmatpush2.msra.mxu0 0.0
    %701 = vmatprep.subr.mxu0 0.0
    %702 = vmatpush2.msra.mxu0 0.0
    %703 = vmatprep.subr.mxu0 0.0
    %704 = vmatpush2.msra.mxu0 0.0
    %705 = vmatprep.subr.mxu0 0.0
    %706 = vmatpush2.msra.mxu0 0.0
    %707 = vmatprep.subr.mxu0 0.0
    %708 = vmatpush2.msra.mxu0 0.0
    %709 = vmatprep.mubr.f32.mxu0 0.0
    %710 = vmatmul.mubr.f32.gmra.mxu0 %v643
    %v711 = vpop.f32.mrf.mxu0
    %v712 = vadd.f32 0.0, %v711
    %v713 = vpop.f32.mrf.mxu0
    %v714 = vadd.f32 0.0, %v713
    %715 = vdwg.mxu0
    %716 = vmatprep.subr.mxu0 %v298
    %717 = vmatpush1.msra.mxu0 %v297
    %718 = vmatprep.subr.mxu0 %v294
    %719 = vmatpush1.msra.mxu0 %v293
    %720 = vmatprep.subr.mxu0 %v290
    %721 = vmatpush1.msra.mxu0 %v289
    %722 = vmatprep.subr.mxu0 %v286
    %723 = vmatpush1.msra.mxu0 %v285
    %724 = vmatprep.subr.mxu0 %v282
    %725 = vmatpush1.msra.mxu0 %v281
    %726 = vmatprep.subr.mxu0 %v278
    %727 = vmatpush1.msra.mxu0 %v277
    %728 = vmatprep.subr.mxu0 %v274
    %729 = vmatpush1.msra.mxu0 %v273
    %730 = vmatprep.subr.mxu0 %v270
    %731 = vmatpush1.msra.mxu0 %v269
    %732 = vmatprep.subr.mxu0 %v266
    %733 = vmatpush1.msra.mxu0 %v265
    %734 = vmatprep.subr.mxu0 %v262
    %735 = vmatpush1.msra.mxu0 %v261
    %736 = vmatprep.subr.mxu0 %v258
    %737 = vmatpush1.msra.mxu0 %v257
    %738 = vmatprep.subr.mxu0 %v254
    %739 = vmatpush1.msra.mxu0 %v253
    %740 = vmatprep.subr.mxu0 %v250
    %741 = vmatpush1.msra.mxu0 %v249
    %742 = vmatprep.subr.mxu0 %v246
    %743 = vmatpush1.msra.mxu0 %v245
    %744 = vmatprep.subr.mxu0 %v242
    %745 = vmatpush1.msra.mxu0 %v241
    %746 = vmatprep.subr.mxu0 %v238
    %747 = vmatpush1.msra.mxu0 %v237
    %748 = vmatprep.subr.mxu0 0.0
    %749 = vmatpush2.msra.mxu0 0.0
    %750 = vmatprep.subr.mxu0 0.0
    %751 = vmatpush2.msra.mxu0 0.0
    %752 = vmatprep.subr.mxu0 0.0
    %753 = vmatpush2.msra.mxu0 0.0
    %754 = vmatprep.subr.mxu0 0.0
    %755 = vmatpush2.msra.mxu0 0.0
    %756 = vmatprep.subr.mxu0 0.0
    %757 = vmatpush2.msra.mxu0 0.0
    %758 = vmatprep.subr.mxu0 0.0
    %759 = vmatpush2.msra.mxu0 0.0
    %760 = vmatprep.subr.mxu0 0.0
    %761 = vmatpush2.msra.mxu0 0.0
    %762 = vmatprep.subr.mxu0 0.0
    %763 = vmatpush2.msra.mxu0 0.0
    %764 = vmatprep.subr.mxu0 0.0
    %765 = vmatpush2.msra.mxu0 0.0
    %766 = vmatprep.subr.mxu0 0.0
    %767 = vmatpush2.msra.mxu0 0.0
    %768 = vmatprep.subr.mxu0 0.0
    %769 = vmatpush2.msra.mxu0 0.0
    %770 = vmatprep.subr.mxu0 0.0
    %771 = vmatpush2.msra.mxu0 0.0
    %772 = vmatprep.subr.mxu0 0.0
    %773 = vmatpush2.msra.mxu0 0.0
    %774 = vmatprep.subr.mxu0 0.0
    %775 = vmatpush2.msra.mxu0 0.0
    %776 = vmatprep.subr.mxu0 0.0
    %777 = vmatpush2.msra.mxu0 0.0
    %778 = vmatprep.subr.mxu0 0.0
    %779 = vmatpush2.msra.mxu0 0.0
    %780 = vmatprep.mubr.f32.mxu0 0.0
    %781 = vmatmul.mubr.f32.gmra.mxu0 %v643
    %v782 = vpop.f32.mrf.mxu0
    %v783 = vadd.f32 0.0, %v782
    %v784 = vpop.f32.mrf.mxu0
    %v785 = vadd.f32 0.0, %v784
    %786 = vdwg.mxu0
    %v791 = vrot.slane %v712, 6
    %v792 = vrot.slane %v714, 6
    %v793 = vrot.slane %v783, 6
    %v794 = vrot.slane %v785, 6
    %v799 = vadd.f32 %v160, %v791
    %v800 = vadd.f32 %v162, %v792
    %v801 = vadd.f32 %v231, %v793
    %v802 = vadd.f32 %v233, %v794
    %v803 = vmul.f32 %v799, 0.5
    %v804 = vmul.f32 %v800, 0.5
    %v805 = vmul.f32 %v801, 0.5
    %v806 = vtanh.pop %v803
    %v807 = vtanh.pop %v804
    %v808 = vtanh.pop %v805
    %v809 = vmul.f32 %v806, 0.5
    %v810 = vmul.f32 %v807, 0.5
    %v811 = vmul.f32 %v808, 0.5
    %v812 = vadd.f32 %v809, 0.5
    %v813 = vadd.f32 %v810, 0.5
    %v814 = vadd.f32 %v811, 0.5
    %v815 = vtanh.pop %v802
    %v817 = vrot.slane %v639, 7
    %v819 = vmul.f32 %v813, %v817
    %v820 = vmul.f32 %v812, %v815
    %v821 = vadd.f32 %v819, %v820
    %v822 = vtanh.pop %v821
    %v823 = vmul.f32 %v814, %v822
    %v825 = vrot.slane %v823, 2
    %827 = vmatprep.subr.mxu0 %v296
    %828 = vmatpush1.msra.mxu0 %v295
    %829 = vmatprep.subr.mxu0 %v292
    %830 = vmatpush1.msra.mxu0 %v291
    %831 = vmatprep.subr.mxu0 %v288
    %832 = vmatpush1.msra.mxu0 %v287
    %833 = vmatprep.subr.mxu0 %v284
    %834 = vmatpush1.msra.mxu0 %v283
    %835 = vmatprep.subr.mxu0 %v280
    %836 = vmatpush1.msra.mxu0 %v279
    %837 = vmatprep.subr.mxu0 %v276
    %838 = vmatpush1.msra.mxu0 %v275
    %839 = vmatprep.subr.mxu0 %v272
    %840 = vmatpush1.msra.mxu0 %v271
    %841 = vmatprep.subr.mxu0 %v268
    %842 = vmatpush1.msra.mxu0 %v267
    %843 = vmatprep.subr.mxu0 %v264
    %844 = vmatpush1.msra.mxu0 %v263
    %845 = vmatprep.subr.mxu0 %v260
    %846 = vmatpush1.msra.mxu0 %v259
    %847 = vmatprep.subr.mxu0 %v256
    %848 = vmatpush1.msra.mxu0 %v255
    %849 = vmatprep.subr.mxu0 %v252
    %850 = vmatpush1.msra.mxu0 %v251
    %851 = vmatprep.subr.mxu0 %v248
    %852 = vmatpush1.msra.mxu0 %v247
    %853 = vmatprep.subr.mxu0 %v244
    %854 = vmatpush1.msra.mxu0 %v243
    %855 = vmatprep.subr.mxu0 %v240
    %856 = vmatpush1.msra.mxu0 %v239
    %857 = vmatprep.subr.mxu0 %v236
    %858 = vmatpush1.msra.mxu0 %v235
    %859 = vmatprep.subr.mxu0 0.0
    %860 = vmatpush2.msra.mxu0 0.0
    %861 = vmatprep.subr.mxu0 0.0
    %862 = vmatpush2.msra.mxu0 0.0
    %863 = vmatprep.subr.mxu0 0.0
    %864 = vmatpush2.msra.mxu0 0.0
    %865 = vmatprep.subr.mxu0 0.0
    %866 = vmatpush2.msra.mxu0 0.0
    %867 = vmatprep.subr.mxu0 0.0
    %868 = vmatpush2.msra.mxu0 0.0
    %869 = vmatprep.subr.mxu0 0.0
    %870 = vmatpush2.msra.mxu0 0.0
    %871 = vmatprep.subr.mxu0 0.0
    %872 = vmatpush2.msra.mxu0 0.0
    %873 = vmatprep.subr.mxu0 0.0
    %874 = vmatpush2.msra.mxu0 0.0
    %875 = vmatprep.subr.mxu0 0.0
    %876 = vmatpush2.msra.mxu0 0.0
    %877 = vmatprep.subr.mxu0 0.0
    %878 = vmatpush2.msra.mxu0 0.0
    %879 = vmatprep.subr.mxu0 0.0
    %880 = vmatpush2.msra.mxu0 0.0
    %881 = vmatprep.subr.mxu0 0.0
    %882 = vmatpush2.msra.mxu0 0.0
    %883 = vmatprep.subr.mxu0 0.0
    %884 = vmatpush2.msra.mxu0 0.0
    %885 = vmatprep.subr.mxu0 0.0
    %886 = vmatpush2.msra.mxu0 0.0
    %887 = vmatprep.subr.mxu0 0.0
    %888 = vmatpush2.msra.mxu0 0.0
    %889 = vmatprep.subr.mxu0 0.0
    %890 = vmatpush2.msra.mxu0 0.0
    %891 = vmatprep.mubr.f32.mxu0 0.0
    %892 = vmatmul.mubr.f32.gmra.mxu0 %v825
    %v893 = vpop.f32.mrf.mxu0
    %v894 = vadd.f32 0.0, %v893
    %v895 = vpop.f32.mrf.mxu0
    %v896 = vadd.f32 0.0, %v895
    %897 = vdwg.mxu0
    %898 = vmatprep.subr.mxu0 %v298
    %899 = vmatpush1.msra.mxu0 %v297
    %900 = vmatprep.subr.mxu0 %v294
    %901 = vmatpush1.msra.mxu0 %v293
    %902 = vmatprep.subr.mxu0 %v290
    %903 = vmatpush1.msra.mxu0 %v289
    %904 = vmatprep.subr.mxu0 %v286
    %905 = vmatpush1.msra.mxu0 %v285
    %906 = vmatprep.subr.mxu0 %v282
    %907 = vmatpush1.msra.mxu0 %v281
    %908 = vmatprep.subr.mxu0 %v278
    %909 = vmatpush1.msra.mxu0 %v277
    %910 = vmatprep.subr.mxu0 %v274
    %911 = vmatpush1.msra.mxu0 %v273
    %912 = vmatprep.subr.mxu0 %v270
    %913 = vmatpush1.msra.mxu0 %v269
    %914 = vmatprep.subr.mxu0 %v266
    %915 = vmatpush1.msra.mxu0 %v265
    %916 = vmatprep.subr.mxu0 %v262
    %917 = vmatpush1.msra.mxu0 %v261
    %918 = vmatprep.subr.mxu0 %v258
    %919 = vmatpush1.msra.mxu0 %v257
    %920 = vmatprep.subr.mxu0 %v254
    %921 = vmatpush1.msra.mxu0 %v253
    %922 = vmatprep.subr.mxu0 %v250
    %923 = vmatpush1.msra.mxu0 %v249
    %924 = vmatprep.subr.mxu0 %v246
    %925 = vmatpush1.msra.mxu0 %v245
    %926 = vmatprep.subr.mxu0 %v242
    %927 = vmatpush1.msra.mxu0 %v241
    %928 = vmatprep.subr.mxu0 %v238
    %929 = vmatpush1.msra.mxu0 %v237
    %930 = vmatprep.subr.mxu0 0.0
    %931 = vmatpush2.msra.mxu0 0.0
    %932 = vmatprep.subr.mxu0 0.0
    %933 = vmatpush2.msra.mxu0 0.0
    %934 = vmatprep.subr.mxu0 0.0
    %935 = vmatpush2.msra.mxu0 0.0
    %936 = vmatprep.subr.mxu0 0.0
    %937 = vmatpush2.msra.mxu0 0.0
    %938 = vmatprep.subr.mxu0 0.0
    %939 = vmatpush2.msra.mxu0 0.0
    %940 = vmatprep.subr.mxu0 0.0
    %941 = vmatpush2.msra.mxu0 0.0
    %942 = vmatprep.subr.mxu0 0.0
    %943 = vmatpush2.msra.mxu0 0.0
    %944 = vmatprep.subr.mxu0 0.0
    %945 = vmatpush2.msra.mxu0 0.0
    %946 = vmatprep.subr.mxu0 0.0
    %947 = vmatpush2.msra.mxu0 0.0
    %948 = vmatprep.subr.mxu0 0.0
    %949 = vmatpush2.msra.mxu0 0.0
    %950 = vmatprep.subr.mxu0 0.0
    %951 = vmatpush2.msra.mxu0 0.0
    %952 = vmatprep.subr.mxu0 0.0
    %953 = vmatpush2.msra.mxu0 0.0
    %954 = vmatprep.subr.mxu0 0.0
    %955 = vmatpush2.msra.mxu0 0.0
    %956 = vmatprep.subr.mxu0 0.0
    %957 = vmatpush2.msra.mxu0 0.0
    %958 = vmatprep.subr.mxu0 0.0
    %959 = vmatpush2.msra.mxu0 0.0
    %960 = vmatprep.subr.mxu0 0.0
    %961 = vmatpush2.msra.mxu0 0.0
    %962 = vmatprep.mubr.f32.mxu0 0.0
    %963 = vmatmul.mubr.f32.gmra.mxu0 %v825
    %v964 = vpop.f32.mrf.mxu0
    %v965 = vadd.f32 0.0, %v964
    %v966 = vpop.f32.mrf.mxu0
    %v967 = vadd.f32 0.0, %v966
    %968 = vdwg.mxu0
    %v973 = vrot.slane %v894, 5
    %v974 = vrot.slane %v896, 5
    %v975 = vrot.slane %v965, 5
    %v976 = vrot.slane %v967, 5
    %v981 = vadd.f32 %v160, %v973
    %v982 = vadd.f32 %v162, %v974
    %v983 = vadd.f32 %v231, %v975
    %v984 = vadd.f32 %v233, %v976
    %v985 = vmul.f32 %v981, 0.5
    %v986 = vmul.f32 %v982, 0.5
    %v987 = vmul.f32 %v983, 0.5
    %v988 = vtanh.pop %v985
    %v989 = vtanh.pop %v986
    %v990 = vtanh.pop %v987
    %v991 = vmul.f32 %v988, 0.5
    %v992 = vmul.f32 %v989, 0.5
    %v993 = vmul.f32 %v990, 0.5
    %v994 = vadd.f32 %v991, 0.5
    %v995 = vadd.f32 %v992, 0.5
    %v996 = vadd.f32 %v993, 0.5
    %v997 = vtanh.pop %v984
    %v999 = vrot.slane %v821, 7
    %v1001 = vmul.f32 %v995, %v999
    %v1002 = vmul.f32 %v994, %v997
    %v1003 = vadd.f32 %v1001, %v1002
    %v1004 = vtanh.pop %v1003
    %v1005 = vmul.f32 %v996, %v1004
    %v1007 = vrot.slane %v1005, 3
    %1009 = vmatprep.subr.mxu0 %v296
    %1010 = vmatpush1.msra.mxu0 %v295
    %1011 = vmatprep.subr.mxu0 %v292
    %1012 = vmatpush1.msra.mxu0 %v291
    %1013 = vmatprep.subr.mxu0 %v288
    %1014 = vmatpush1.msra.mxu0 %v287
    %1015 = vmatprep.subr.mxu0 %v284
    %1016 = vmatpush1.msra.mxu0 %v283
    %1017 = vmatprep.subr.mxu0 %v280
    %1018 = vmatpush1.msra.mxu0 %v279
    %1019 = vmatprep.subr.mxu0 %v276
    %1020 = vmatpush1.msra.mxu0 %v275
    %1021 = vmatprep.subr.mxu0 %v272
    %1022 = vmatpush1.msra.mxu0 %v271
    %1023 = vmatprep.subr.mxu0 %v268
    %1024 = vmatpush1.msra.mxu0 %v267
    %1025 = vmatprep.subr.mxu0 %v264
    %1026 = vmatpush1.msra.mxu0 %v263
    %1027 = vmatprep.subr.mxu0 %v260
    %1028 = vmatpush1.msra.mxu0 %v259
    %1029 = vmatprep.subr.mxu0 %v256
    %1030 = vmatpush1.msra.mxu0 %v255
    %1031 = vmatprep.subr.mxu0 %v252
    %1032 = vmatpush1.msra.mxu0 %v251
    %1033 = vmatprep.subr.mxu0 %v248
    %1034 = vmatpush1.msra.mxu0 %v247
    %1035 = vmatprep.subr.mxu0 %v244
    %1036 = vmatpush1.msra.mxu0 %v243
    %1037 = vmatprep.subr.mxu0 %v240
    %1038 = vmatpush1.msra.mxu0 %v239
    %1039 = vmatprep.subr.mxu0 %v236
    %1040 = vmatpush1.msra.mxu0 %v235
    %1041 = vmatprep.subr.mxu0 0.0
    %1042 = vmatpush2.msra.mxu0 0.0
    %1043 = vmatprep.subr.mxu0 0.0
    %1044 = vmatpush2.msra.mxu0 0.0
    %1045 = vmatprep.subr.mxu0 0.0
    %1046 = vmatpush2.msra.mxu0 0.0
    %1047 = vmatprep.subr.mxu0 0.0
    %1048 = vmatpush2.msra.mxu0 0.0
    %1049 = vmatprep.subr.mxu0 0.0
    %1050 = vmatpush2.msra.mxu0 0.0
    %1051 = vmatprep.subr.mxu0 0.0
    %1052 = vmatpush2.msra.mxu0 0.0
    %1053 = vmatprep.subr.mxu0 0.0
    %1054 = vmatpush2.msra.mxu0 0.0
    %1055 = vmatprep.subr.mxu0 0.0
    %1056 = vmatpush2.msra.mxu0 0.0
    %1057 = vmatprep.subr.mxu0 0.0
    %1058 = vmatpush2.msra.mxu0 0.0
    %1059 = vmatprep.subr.mxu0 0.0
    %1060 = vmatpush2.msra.mxu0 0.0
    %1061 = vmatprep.subr.mxu0 0.0
    %1062 = vmatpush2.msra.mxu0 0.0
    %1063 = vmatprep.subr.mxu0 0.0
    %1064 = vmatpush2.msra.mxu0 0.0
    %1065 = vmatprep.subr.mxu0 0.0
    %1066 = vmatpush2.msra.mxu0 0.0
    %1067 = vmatprep.subr.mxu0 0.0
    %1068 = vmatpush2.msra.mxu0 0.0
    %1069 = vmatprep.subr.mxu0 0.0
    %1070 = vmatpush2.msra.mxu0 0.0
    %1071 = vmatprep.subr.mxu0 0.0
    %1072 = vmatpush2.msra.mxu0 0.0
    %1073 = vmatprep.mubr.f32.mxu0 0.0
    %1074 = vmatmul.mubr.f32.gmra.mxu0 %v1007
    %v1075 = vpop.f32.mrf.mxu0
    %v1076 = vadd.f32 0.0, %v1075
    %v1077 = vpop.f32.mrf.mxu0
    %v1078 = vadd.f32 0.0, %v1077
    %1079 = vdwg.mxu0
    %1080 = vmatprep.subr.mxu0 %v298
    %1081 = vmatpush1.msra.mxu0 %v297
    %1082 = vmatprep.subr.mxu0 %v294
    %1083 = vmatpush1.msra.mxu0 %v293
    %1084 = vmatprep.subr.mxu0 %v290
    %1085 = vmatpush1.msra.mxu0 %v289
    %1086 = vmatprep.subr.mxu0 %v286
    %1087 = vmatpush1.msra.mxu0 %v285
    %1088 = vmatprep.subr.mxu0 %v282
    %1089 = vmatpush1.msra.mxu0 %v281
    %1090 = vmatprep.subr.mxu0 %v278
    %1091 = vmatpush1.msra.mxu0 %v277
    %1092 = vmatprep.subr.mxu0 %v274
    %1093 = vmatpush1.msra.mxu0 %v273
    %1094 = vmatprep.subr.mxu0 %v270
    %1095 = vmatpush1.msra.mxu0 %v269
    %1096 = vmatprep.subr.mxu0 %v266
    %1097 = vmatpush1.msra.mxu0 %v265
    %1098 = vmatprep.subr.mxu0 %v262
    %1099 = vmatpush1.msra.mxu0 %v261
    %1100 = vmatprep.subr.mxu0 %v258
    %1101 = vmatpush1.msra.mxu0 %v257
    %1102 = vmatprep.subr.mxu0 %v254
    %1103 = vmatpush1.msra.mxu0 %v253
    %1104 = vmatprep.subr.mxu0 %v250
    %1105 = vmatpush1.msra.mxu0 %v249
    %1106 = vmatprep.subr.mxu0 %v246
    %1107 = vmatpush1.msra.mxu0 %v245
    %1108 = vmatprep.subr.mxu0 %v242
    %1109 = vmatpush1.msra.mxu0 %v241
    %1110 = vmatprep.subr.mxu0 %v238
    %1111 = vmatpush1.msra.mxu0 %v237
    %1112 = vmatprep.subr.mxu0 0.0
    %1113 = vmatpush2.msra.mxu0 0.0
    %1114 = vmatprep.subr.mxu0 0.0
    %1115 = vmatpush2.msra.mxu0 0.0
    %1116 = vmatprep.subr.mxu0 0.0
    %1117 = vmatpush2.msra.mxu0 0.0
    %1118 = vmatprep.subr.mxu0 0.0
    %1119 = vmatpush2.msra.mxu0 0.0
    %1120 = vmatprep.subr.mxu0 0.0
    %1121 = vmatpush2.msra.mxu0 0.0
    %1122 = vmatprep.subr.mxu0 0.0
    %1123 = vmatpush2.msra.mxu0 0.0
    %1124 = vmatprep.subr.mxu0 0.0
    %1125 = vmatpush2.msra.mxu0 0.0
    %1126 = vmatprep.subr.mxu0 0.0
    %1127 = vmatpush2.msra.mxu0 0.0
    %1128 = vmatprep.subr.mxu0 0.0
    %1129 = vmatpush2.msra.mxu0 0.0
    %1130 = vmatprep.subr.mxu0 0.0
    %1131 = vmatpush2.msra.mxu0 0.0
    %1132 = vmatprep.subr.mxu0 0.0
    %1133 = vmatpush2.msra.mxu0 0.0
    %1134 = vmatprep.subr.mxu0 0.0
    %1135 = vmatpush2.msra.mxu0 0.0
    %1136 = vmatprep.subr.mxu0 0.0
    %1137 = vmatpush2.msra.mxu0 0.0
    %1138 = vmatprep.subr.mxu0 0.0
    %1139 = vmatpush2.msra.mxu0 0.0
    %1140 = vmatprep.subr.mxu0 0.0
    %1141 = vmatpush2.msra.mxu0 0.0
    %1142 = vmatprep.subr.mxu0 0.0
    %1143 = vmatpush2.msra.mxu0 0.0
    %1144 = vmatprep.mubr.f32.mxu0 0.0
    %1145 = vmatmul.mubr.f32.gmra.mxu0 %v1007
    %v1146 = vpop.f32.mrf.mxu0
    %v1147 = vadd.f32 0.0, %v1146
    %v1148 = vpop.f32.mrf.mxu0
    %v1149 = vadd.f32 0.0, %v1148
    %1150 = vdwg.mxu0
    %v1155 = vrot.slane %v1076, 4
    %v1156 = vrot.slane %v1078, 4
    %v1157 = vrot.slane %v1147, 4
    %v1158 = vrot.slane %v1149, 4
    %v1163 = vadd.f32 %v160, %v1155
    %v1164 = vadd.f32 %v162, %v1156
    %v1165 = vadd.f32 %v231, %v1157
    %v1166 = vadd.f32 %v233, %v1158
    %v1167 = vmul.f32 %v1163, 0.5
    %v1168 = vmul.f32 %v1164, 0.5
    %v1169 = vmul.f32 %v1165, 0.5
    %v1170 = vtanh.pop %v1167
    %v1171 = vtanh.pop %v1168
    %v1172 = vtanh.pop %v1169
    %v1173 = vmul.f32 %v1170, 0.5
    %v1174 = vmul.f32 %v1171, 0.5
    %v1175 = vmul.f32 %v1172, 0.5
    %v1176 = vadd.f32 %v1173, 0.5
    %v1177 = vadd.f32 %v1174, 0.5
    %v1178 = vadd.f32 %v1175, 0.5
    %v1179 = vtanh.pop %v1166
    %v1181 = vrot.slane %v1003, 7
    %v1183 = vmul.f32 %v1177, %v1181
    %v1184 = vmul.f32 %v1176, %v1179
    %v1185 = vadd.f32 %v1183, %v1184
    %v1186 = vtanh.pop %v1185
    %v1187 = vmul.f32 %v1178, %v1186
    %v1189 = vrot.slane %v1187, 4
    %1191 = vmatprep.subr.mxu0 %v296
    %1192 = vmatpush1.msra.mxu0 %v295
    %1193 = vmatprep.subr.mxu0 %v292
    %1194 = vmatpush1.msra.mxu0 %v291
    %1195 = vmatprep.subr.mxu0 %v288
    %1196 = vmatpush1.msra.mxu0 %v287
    %1197 = vmatprep.subr.mxu0 %v284
    %1198 = vmatpush1.msra.mxu0 %v283
    %1199 = vmatprep.subr.mxu0 %v280
    %1200 = vmatpush1.msra.mxu0 %v279
    %1201 = vmatprep.subr.mxu0 %v276
    %1202 = vmatpush1.msra.mxu0 %v275
    %1203 = vmatprep.subr.mxu0 %v272
    %1204 = vmatpush1.msra.mxu0 %v271
    %1205 = vmatprep.subr.mxu0 %v268
    %1206 = vmatpush1.msra.mxu0 %v267
    %1207 = vmatprep.subr.mxu0 %v264
    %1208 = vmatpush1.msra.mxu0 %v263
    %1209 = vmatprep.subr.mxu0 %v260
    %1210 = vmatpush1.msra.mxu0 %v259
    %1211 = vmatprep.subr.mxu0 %v256
    %1212 = vmatpush1.msra.mxu0 %v255
    %1213 = vmatprep.subr.mxu0 %v252
    %1214 = vmatpush1.msra.mxu0 %v251
    %1215 = vmatprep.subr.mxu0 %v248
    %1216 = vmatpush1.msra.mxu0 %v247
    %1217 = vmatprep.subr.mxu0 %v244
    %1218 = vmatpush1.msra.mxu0 %v243
    %1219 = vmatprep.subr.mxu0 %v240
    %1220 = vmatpush1.msra.mxu0 %v239
    %1221 = vmatprep.subr.mxu0 %v236
    %1222 = vmatpush1.msra.mxu0 %v235
    %1223 = vmatprep.subr.mxu0 0.0
    %1224 = vmatpush2.msra.mxu0 0.0
    %1225 = vmatprep.subr.mxu0 0.0
    %1226 = vmatpush2.msra.mxu0 0.0
    %1227 = vmatprep.subr.mxu0 0.0
    %1228 = vmatpush2.msra.mxu0 0.0
    %1229 = vmatprep.subr.mxu0 0.0
    %1230 = vmatpush2.msra.mxu0 0.0
    %1231 = vmatprep.subr.mxu0 0.0
    %1232 = vmatpush2.msra.mxu0 0.0
    %1233 = vmatprep.subr.mxu0 0.0
    %1234 = vmatpush2.msra.mxu0 0.0
    %1235 = vmatprep.subr.mxu0 0.0
    %1236 = vmatpush2.msra.mxu0 0.0
    %1237 = vmatprep.subr.mxu0 0.0
    %1238 = vmatpush2.msra.mxu0 0.0
    %1239 = vmatprep.subr.mxu0 0.0
    %1240 = vmatpush2.msra.mxu0 0.0
    %1241 = vmatprep.subr.mxu0 0.0
    %1242 = vmatpush2.msra.mxu0 0.0
    %1243 = vmatprep.subr.mxu0 0.0
    %1244 = vmatpush2.msra.mxu0 0.0
    %1245 = vmatprep.subr.mxu0 0.0
    %1246 = vmatpush2.msra.mxu0 0.0
    %1247 = vmatprep.subr.mxu0 0.0
    %1248 = vmatpush2.msra.mxu0 0.0
    %1249 = vmatprep.subr.mxu0 0.0
    %1250 = vmatpush2.msra.mxu0 0.0
    %1251 = vmatprep.subr.mxu0 0.0
    %1252 = vmatpush2.msra.mxu0 0.0
    %1253 = vmatprep.subr.mxu0 0.0
    %1254 = vmatpush2.msra.mxu0 0.0
    %1255 = vmatprep.mubr.f32.mxu0 0.0
    %1256 = vmatmul.mubr.f32.gmra.mxu0 %v1189
    %v1257 = vpop.f32.mrf.mxu0
    %v1258 = vadd.f32 0.0, %v1257
    %v1259 = vpop.f32.mrf.mxu0
    %v1260 = vadd.f32 0.0, %v1259
    %1261 = vdwg.mxu0
    %1262 = vmatprep.subr.mxu0 %v298
    %1263 = vmatpush1.msra.mxu0 %v297
    %1264 = vmatprep.subr.mxu0 %v294
    %1265 = vmatpush1.msra.mxu0 %v293
    %1266 = vmatprep.subr.mxu0 %v290
    %1267 = vmatpush1.msra.mxu0 %v289
    %1268 = vmatprep.subr.mxu0 %v286
    %1269 = vmatpush1.msra.mxu0 %v285
    %1270 = vmatprep.subr.mxu0 %v282
    %1271 = vmatpush1.msra.mxu0 %v281
    %1272 = vmatprep.subr.mxu0 %v278
    %1273 = vmatpush1.msra.mxu0 %v277
    %1274 = vmatprep.subr.mxu0 %v274
    %1275 = vmatpush1.msra.mxu0 %v273
    %1276 = vmatprep.subr.mxu0 %v270
    %1277 = vmatpush1.msra.mxu0 %v269
    %1278 = vmatprep.subr.mxu0 %v266
    %1279 = vmatpush1.msra.mxu0 %v265
    %1280 = vmatprep.subr.mxu0 %v262
    %1281 = vmatpush1.msra.mxu0 %v261
    %1282 = vmatprep.subr.mxu0 %v258
    %1283 = vmatpush1.msra.mxu0 %v257
    %1284 = vmatprep.subr.mxu0 %v254
    %1285 = vmatpush1.msra.mxu0 %v253
    %1286 = vmatprep.subr.mxu0 %v250
    %1287 = vmatpush1.msra.mxu0 %v249
    %1288 = vmatprep.subr.mxu0 %v246
    %1289 = vmatpush1.msra.mxu0 %v245
    %1290 = vmatprep.subr.mxu0 %v242
    %1291 = vmatpush1.msra.mxu0 %v241
    %1292 = vmatprep.subr.mxu0 %v238
    %1293 = vmatpush1.msra.mxu0 %v237
    %1294 = vmatprep.subr.mxu0 0.0
    %1295 = vmatpush2.msra.mxu0 0.0
    %1296 = vmatprep.subr.mxu0 0.0
    %1297 = vmatpush2.msra.mxu0 0.0
    %1298 = vmatprep.subr.mxu0 0.0
    %1299 = vmatpush2.msra.mxu0 0.0
    %1300 = vmatprep.subr.mxu0 0.0
    %1301 = vmatpush2.msra.mxu0 0.0
    %1302 = vmatprep.subr.mxu0 0.0
    %1303 = vmatpush2.msra.mxu0 0.0
    %1304 = vmatprep.subr.mxu0 0.0
    %1305 = vmatpush2.msra.mxu0 0.0
    %1306 = vmatprep.subr.mxu0 0.0
    %1307 = vmatpush2.msra.mxu0 0.0
    %1308 = vmatprep.subr.mxu0 0.0
    %1309 = vmatpush2.msra.mxu0 0.0
    %1310 = vmatprep.subr.mxu0 0.0
    %1311 = vmatpush2.msra.mxu0 0.0
    %1312 = vmatprep.subr.mxu0 0.0
    %1313 = vmatpush2.msra.mxu0 0.0
    %1314 = vmatprep.subr.mxu0 0.0
    %1315 = vmatpush2.msra.mxu0 0.0
    %1316 = vmatprep.subr.mxu0 0.0
    %1317 = vmatpush2.msra.mxu0 0.0
    %1318 = vmatprep.subr.mxu0 0.0
    %1319 = vmatpush2.msra.mxu0 0.0
    %1320 = vmatprep.subr.mxu0 0.0
    %1321 = vmatpush2.msra.mxu0 0.0
    %1322 = vmatprep.subr.mxu0 0.0
    %1323 = vmatpush2.msra.mxu0 0.0
    %1324 = vmatprep.subr.mxu0 0.0
    %1325 = vmatpush2.msra.mxu0 0.0
    %1326 = vmatprep.mubr.f32.mxu0 0.0
    %1327 = vmatmul.mubr.f32.gmra.mxu0 %v1189
    %v1328 = vpop.f32.mrf.mxu0
    %v1329 = vadd.f32 0.0, %v1328
    %v1330 = vpop.f32.mrf.mxu0
    %v1331 = vadd.f32 0.0, %v1330
    %1332 = vdwg.mxu0
    %v1337 = vrot.slane %v1258, 3
    %v1338 = vrot.slane %v1260, 3
    %v1339 = vrot.slane %v1329, 3
    %v1340 = vrot.slane %v1331, 3
    %v1345 = vadd.f32 %v160, %v1337
    %v1346 = vadd.f32 %v162, %v1338
    %v1347 = vadd.f32 %v231, %v1339
    %v1348 = vadd.f32 %v233, %v1340
    %v1349 = vmul.f32 %v1345, 0.5
    %v1350 = vmul.f32 %v1346, 0.5
    %v1351 = vmul.f32 %v1347, 0.5
    %v1352 = vtanh.pop %v1349
    %v1353 = vtanh.pop %v1350
    %v1354 = vtanh.pop %v1351
    %v1355 = vmul.f32 %v1352, 0.5
    %v1356 = vmul.f32 %v1353, 0.5
    %v1357 = vmul.f32 %v1354, 0.5
    %v1358 = vadd.f32 %v1355, 0.5
    %v1359 = vadd.f32 %v1356, 0.5
    %v1360 = vadd.f32 %v1357, 0.5
    %v1361 = vtanh.pop %v1348
    %v1363 = vrot.slane %v1185, 7
    %v1365 = vmul.f32 %v1359, %v1363
    %v1366 = vmul.f32 %v1358, %v1361
    %v1367 = vadd.f32 %v1365, %v1366
    %v1368 = vtanh.pop %v1367
    %v1369 = vmul.f32 %v1360, %v1368
    %v1371 = vrot.slane %v1369, 5
    %1373 = vmatprep.subr.mxu0 %v296
    %1374 = vmatpush1.msra.mxu0 %v295
    %1375 = vmatprep.subr.mxu0 %v292
    %1376 = vmatpush1.msra.mxu0 %v291
    %1377 = vmatprep.subr.mxu0 %v288
    %1378 = vmatpush1.msra.mxu0 %v287
    %1379 = vmatprep.subr.mxu0 %v284
    %1380 = vmatpush1.msra.mxu0 %v283
    %1381 = vmatprep.subr.mxu0 %v280
    %1382 = vmatpush1.msra.mxu0 %v279
    %1383 = vmatprep.subr.mxu0 %v276
    %1384 = vmatpush1.msra.mxu0 %v275
    %1385 = vmatprep.subr.mxu0 %v272
    %1386 = vmatpush1.msra.mxu0 %v271
    %1387 = vmatprep.subr.mxu0 %v268
    %1388 = vmatpush1.msra.mxu0 %v267
    %1389 = vmatprep.subr.mxu0 %v264
    %1390 = vmatpush1.msra.mxu0 %v263
    %1391 = vmatprep.subr.mxu0 %v260
    %1392 = vmatpush1.msra.mxu0 %v259
    %1393 = vmatprep.subr.mxu0 %v256
    %1394 = vmatpush1.msra.mxu0 %v255
    %1395 = vmatprep.subr.mxu0 %v252
    %1396 = vmatpush1.msra.mxu0 %v251
    %1397 = vmatprep.subr.mxu0 %v248
    %1398 = vmatpush1.msra.mxu0 %v247
    %1399 = vmatprep.subr.mxu0 %v244
    %1400 = vmatpush1.msra.mxu0 %v243
    %1401 = vmatprep.subr.mxu0 %v240
    %1402 = vmatpush1.msra.mxu0 %v239
    %1403 = vmatprep.subr.mxu0 %v236
    %1404 = vmatpush1.msra.mxu0 %v235
    %1405 = vmatprep.subr.mxu0 0.0
    %1406 = vmatpush2.msra.mxu0 0.0
    %1407 = vmatprep.subr.mxu0 0.0
    %1408 = vmatpush2.msra.mxu0 0.0
    %1409 = vmatprep.subr.mxu0 0.0
    %1410 = vmatpush2.msra.mxu0 0.0
    %1411 = vmatprep.subr.mxu0 0.0
    %1412 = vmatpush2.msra.mxu0 0.0
    %1413 = vmatprep.subr.mxu0 0.0
    %1414 = vmatpush2.msra.mxu0 0.0
    %1415 = vmatprep.subr.mxu0 0.0
    %1416 = vmatpush2.msra.mxu0 0.0
    %1417 = vmatprep.subr.mxu0 0.0
    %1418 = vmatpush2.msra.mxu0 0.0
    %1419 = vmatprep.subr.mxu0 0.0
    %1420 = vmatpush2.msra.mxu0 0.0
    %1421 = vmatprep.subr.mxu0 0.0
    %1422 = vmatpush2.msra.mxu0 0.0
    %1423 = vmatprep.subr.mxu0 0.0
    %1424 = vmatpush2.msra.mxu0 0.0
    %1425 = vmatprep.subr.mxu0 0.0
    %1426 = vmatpush2.msra.mxu0 0.0
    %1427 = vmatprep.subr.mxu0 0.0
    %1428 = vmatpush2.msra.mxu0 0.0
    %1429 = vmatprep.subr.mxu0 0.0
    %1430 = vmatpush2.msra.mxu0 0.0
    %1431 = vmatprep.subr.mxu0 0.0
    %1432 = vmatpush2.msra.mxu0 0.0
    %1433 = vmatprep.subr.mxu0 0.0
    %1434 = vmatpush2.msra.mxu0 0.0
    %1435 = vmatprep.subr.mxu0 0.0
    %1436 = vmatpush2.msra.mxu0 0.0
    %1437 = vmatprep.mubr.f32.mxu0 0.0
    %1438 = vmatmul.mubr.f32.gmra.mxu0 %v1371
    %v1439 = vpop.f32.mrf.mxu0
    %v1440 = vadd.f32 0.0, %v1439
    %v1441 = vpop.f32.mrf.mxu0
    %v1442 = vadd.f32 0.0, %v1441
    %1443 = vdwg.mxu0
    %1444 = vmatprep.subr.mxu0 %v298
    %1445 = vmatpush1.msra.mxu0 %v297
    %1446 = vmatprep.subr.mxu0 %v294
    %1447 = vmatpush1.msra.mxu0 %v293
    %1448 = vmatprep.subr.mxu0 %v290
    %1449 = vmatpush1.msra.mxu0 %v289
    %1450 = vmatprep.subr.mxu0 %v286
    %1451 = vmatpush1.msra.mxu0 %v285
    %1452 = vmatprep.subr.mxu0 %v282
    %1453 = vmatpush1.msra.mxu0 %v281
    %1454 = vmatprep.subr.mxu0 %v278
    %1455 = vmatpush1.msra.mxu0 %v277
    %1456 = vmatprep.subr.mxu0 %v274
    %1457 = vmatpush1.msra.mxu0 %v273
    %1458 = vmatprep.subr.mxu0 %v270
    %1459 = vmatpush1.msra.mxu0 %v269
    %1460 = vmatprep.subr.mxu0 %v266
    %1461 = vmatpush1.msra.mxu0 %v265
    %1462 = vmatprep.subr.mxu0 %v262
    %1463 = vmatpush1.msra.mxu0 %v261
    %1464 = vmatprep.subr.mxu0 %v258
    %1465 = vmatpush1.msra.mxu0 %v257
    %1466 = vmatprep.subr.mxu0 %v254
    %1467 = vmatpush1.msra.mxu0 %v253
    %1468 = vmatprep.subr.mxu0 %v250
    %1469 = vmatpush1.msra.mxu0 %v249
    %1470 = vmatprep.subr.mxu0 %v246
    %1471 = vmatpush1.msra.mxu0 %v245
    %1472 = vmatprep.subr.mxu0 %v242
    %1473 = vmatpush1.msra.mxu0 %v241
    %1474 = vmatprep.subr.mxu0 %v238
    %1475 = vmatpush1.msra.mxu0 %v237
    %1476 = vmatprep.subr.mxu0 0.0
    %1477 = vmatpush2.msra.mxu0 0.0
    %1478 = vmatprep.subr.mxu0 0.0
    %1479 = vmatpush2.msra.mxu0 0.0
    %1480 = vmatprep.subr.mxu0 0.0
    %1481 = vmatpush2.msra.mxu0 0.0
    %1482 = vmatprep.subr.mxu0 0.0
    %1483 = vmatpush2.msra.mxu0 0.0
    %1484 = vmatprep.subr.mxu0 0.0
    %1485 = vmatpush2.msra.mxu0 0.0
    %1486 = vmatprep.subr.mxu0 0.0
    %1487 = vmatpush2.msra.mxu0 0.0
    %1488 = vmatprep.subr.mxu0 0.0
    %1489 = vmatpush2.msra.mxu0 0.0
    %1490 = vmatprep.subr.mxu0 0.0
    %1491 = vmatpush2.msra.mxu0 0.0
    %1492 = vmatprep.subr.mxu0 0.0
    %1493 = vmatpush2.msra.mxu0 0.0
    %1494 = vmatprep.subr.mxu0 0.0
    %1495 = vmatpush2.msra.mxu0 0.0
    %1496 = vmatprep.subr.mxu0 0.0
    %1497 = vmatpush2.msra.mxu0 0.0
    %1498 = vmatprep.subr.mxu0 0.0
    %1499 = vmatpush2.msra.mxu0 0.0
    %1500 = vmatprep.subr.mxu0 0.0
    %1501 = vmatpush2.msra.mxu0 0.0
    %1502 = vmatprep.subr.mxu0 0.0
    %1503 = vmatpush2.msra.mxu0 0.0
    %1504 = vmatprep.subr.mxu0 0.0
    %1505 = vmatpush2.msra.mxu0 0.0
    %1506 = vmatprep.subr.mxu0 0.0
    %1507 = vmatpush2.msra.mxu0 0.0
    %1508 = vmatprep.mubr.f32.mxu0 0.0
    %1509 = vmatmul.mubr.f32.gmra.mxu0 %v1371
    %v1510 = vpop.f32.mrf.mxu0
    %v1511 = vadd.f32 0.0, %v1510
    %v1512 = vpop.f32.mrf.mxu0
    %v1513 = vadd.f32 0.0, %v1512
    %1514 = vdwg.mxu0
    %v1519 = vrot.slane %v1440, 2
    %v1520 = vrot.slane %v1442, 2
    %v1521 = vrot.slane %v1511, 2
    %v1522 = vrot.slane %v1513, 2
    %v1527 = vadd.f32 %v160, %v1519
    %v1528 = vadd.f32 %v162, %v1520
    %v1529 = vadd.f32 %v231, %v1521
    %v1530 = vadd.f32 %v233, %v1522
    %v1531 = vmul.f32 %v1527, 0.5
    %v1532 = vmul.f32 %v1528, 0.5
    %v1533 = vmul.f32 %v1529, 0.5
    %v1534 = vtanh.pop %v1531
    %v1535 = vtanh.pop %v1532
    %v1536 = vtanh.pop %v1533
    %v1537 = vmul.f32 %v1534, 0.5
    %v1538 = vmul.f32 %v1535, 0.5
    %v1539 = vmul.f32 %v1536, 0.5
    %v1540 = vadd.f32 %v1537, 0.5
    %v1541 = vadd.f32 %v1538, 0.5
    %v1542 = vadd.f32 %v1539, 0.5
    %v1543 = vtanh.pop %v1530
    %v1545 = vrot.slane %v1367, 7
    %v1547 = vmul.f32 %v1541, %v1545
    %v1548 = vmul.f32 %v1540, %v1543
    %v1549 = vadd.f32 %v1547, %v1548
    %v1550 = vtanh.pop %v1549
    %v1551 = vmul.f32 %v1542, %v1550
    %v1553 = vrot.slane %v1551, 6
    %1555 = vmatprep.subr.mxu0 %v296
    %1556 = vmatpush1.msra.mxu0 %v295
    %1557 = vmatprep.subr.mxu0 %v292
    %1558 = vmatpush1.msra.mxu0 %v291
    %1559 = vmatprep.subr.mxu0 %v288
    %1560 = vmatpush1.msra.mxu0 %v287
    %1561 = vmatprep.subr.mxu0 %v284
    %1562 = vmatpush1.msra.mxu0 %v283
    %1563 = vmatprep.subr.mxu0 %v280
    %1564 = vmatpush1.msra.mxu0 %v279
    %1565 = vmatprep.subr.mxu0 %v276
    %1566 = vmatpush1.msra.mxu0 %v275
    %1567 = vmatprep.subr.mxu0 %v272
    %1568 = vmatpush1.msra.mxu0 %v271
    %1569 = vmatprep.subr.mxu0 %v268
    %1570 = vmatpush1.msra.mxu0 %v267
    %1571 = vmatprep.subr.mxu0 %v264
    %1572 = vmatpush1.msra.mxu0 %v263
    %1573 = vmatprep.subr.mxu0 %v260
    %1574 = vmatpush1.msra.mxu0 %v259
    %1575 = vmatprep.subr.mxu0 %v256
    %1576 = vmatpush1.msra.mxu0 %v255
    %1577 = vmatprep.subr.mxu0 %v252
    %1578 = vmatpush1.msra.mxu0 %v251
    %1579 = vmatprep.subr.mxu0 %v248
    %1580 = vmatpush1.msra.mxu0 %v247
    %1581 = vmatprep.subr.mxu0 %v244
    %1582 = vmatpush1.msra.mxu0 %v243
    %1583 = vmatprep.subr.mxu0 %v240
    %1584 = vmatpush1.msra.mxu0 %v239
    %1585 = vmatprep.subr.mxu0 %v236
    %1586 = vmatpush1.msra.mxu0 %v235
    %1587 = vmatprep.subr.mxu0 0.0
    %1588 = vmatpush2.msra.mxu0 0.0
    %1589 = vmatprep.subr.mxu0 0.0
    %1590 = vmatpush2.msra.mxu0 0.0
    %1591 = vmatprep.subr.mxu0 0.0
    %1592 = vmatpush2.msra.mxu0 0.0
    %1593 = vmatprep.subr.mxu0 0.0
    %1594 = vmatpush2.msra.mxu0 0.0
    %1595 = vmatprep.subr.mxu0 0.0
    %1596 = vmatpush2.msra.mxu0 0.0
    %1597 = vmatprep.subr.mxu0 0.0
    %1598 = vmatpush2.msra.mxu0 0.0
    %1599 = vmatprep.subr.mxu0 0.0
    %1600 = vmatpush2.msra.mxu0 0.0
    %1601 = vmatprep.subr.mxu0 0.0
    %1602 = vmatpush2.msra.mxu0 0.0
    %1603 = vmatprep.subr.mxu0 0.0
    %1604 = vmatpush2.msra.mxu0 0.0
    %1605 = vmatprep.subr.mxu0 0.0
    %1606 = vmatpush2.msra.mxu0 0.0
    %1607 = vmatprep.subr.mxu0 0.0
    %1608 = vmatpush2.msra.mxu0 0.0
    %1609 = vmatprep.subr.mxu0 0.0
    %1610 = vmatpush2.msra.mxu0 0.0
    %1611 = vmatprep.subr.mxu0 0.0
    %1612 = vmatpush2.msra.mxu0 0.0
    %1613 = vmatprep.subr.mxu0 0.0
    %1614 = vmatpush2.msra.mxu0 0.0
    %1615 = vmatprep.subr.mxu0 0.0
    %1616 = vmatpush2.msra.mxu0 0.0
    %1617 = vmatprep.subr.mxu0 0.0
    %1618 = vmatpush2.msra.mxu0 0.0
    %1619 = vmatprep.mubr.f32.mxu0 0.0
    %1620 = vmatmul.mubr.f32.gmra.mxu0 %v1553
    %v1621 = vpop.f32.mrf.mxu0
    %v1622 = vadd.f32 0.0, %v1621
    %v1623 = vpop.f32.mrf.mxu0
    %v1624 = vadd.f32 0.0, %v1623
    %1625 = vdwg.mxu0
    %1626 = vmatprep.subr.mxu0 %v298
    %1627 = vmatpush1.msra.mxu0 %v297
    %1628 = vmatprep.subr.mxu0 %v294
    %1629 = vmatpush1.msra.mxu0 %v293
    %1630 = vmatprep.subr.mxu0 %v290
    %1631 = vmatpush1.msra.mxu0 %v289
    %1632 = vmatprep.subr.mxu0 %v286
    %1633 = vmatpush1.msra.mxu0 %v285
    %1634 = vmatprep.subr.mxu0 %v282
    %1635 = vmatpush1.msra.mxu0 %v281
    %1636 = vmatprep.subr.mxu0 %v278
    %1637 = vmatpush1.msra.mxu0 %v277
    %1638 = vmatprep.subr.mxu0 %v274
    %1639 = vmatpush1.msra.mxu0 %v273
    %1640 = vmatprep.subr.mxu0 %v270
    %1641 = vmatpush1.msra.mxu0 %v269
    %1642 = vmatprep.subr.mxu0 %v266
    %1643 = vmatpush1.msra.mxu0 %v265
    %1644 = vmatprep.subr.mxu0 %v262
    %1645 = vmatpush1.msra.mxu0 %v261
    %1646 = vmatprep.subr.mxu0 %v258
    %1647 = vmatpush1.msra.mxu0 %v257
    %1648 = vmatprep.subr.mxu0 %v254
    %1649 = vmatpush1.msra.mxu0 %v253
    %1650 = vmatprep.subr.mxu0 %v250
    %1651 = vmatpush1.msra.mxu0 %v249
    %1652 = vmatprep.subr.mxu0 %v246
    %1653 = vmatpush1.msra.mxu0 %v245
    %1654 = vmatprep.subr.mxu0 %v242
    %1655 = vmatpush1.msra.mxu0 %v241
    %1656 = vmatprep.subr.mxu0 %v238
    %1657 = vmatpush1.msra.mxu0 %v237
    %1658 = vmatprep.subr.mxu0 0.0
    %1659 = vmatpush2.msra.mxu0 0.0
    %1660 = vmatprep.subr.mxu0 0.0
    %1661 = vmatpush2.msra.mxu0 0.0
    %1662 = vmatprep.subr.mxu0 0.0
    %1663 = vmatpush2.msra.mxu0 0.0
    %1664 = vmatprep.subr.mxu0 0.0
    %1665 = vmatpush2.msra.mxu0 0.0
    %1666 = vmatprep.subr.mxu0 0.0
    %1667 = vmatpush2.msra.mxu0 0.0
    %1668 = vmatprep.subr.mxu0 0.0
    %1669 = vmatpush2.msra.mxu0 0.0
    %1670 = vmatprep.subr.mxu0 0.0
    %1671 = vmatpush2.msra.mxu0 0.0
    %1672 = vmatprep.subr.mxu0 0.0
    %1673 = vmatpush2.msra.mxu0 0.0
    %1674 = vmatprep.subr.mxu0 0.0
    %1675 = vmatpush2.msra.mxu0 0.0
    %1676 = vmatprep.subr.mxu0 0.0
    %1677 = vmatpush2.msra.mxu0 0.0
    %1678 = vmatprep.subr.mxu0 0.0
    %1679 = vmatpush2.msra.mxu0 0.0
    %1680 = vmatprep.subr.mxu0 0.0
    %1681 = vmatpush2.msra.mxu0 0.0
    %1682 = vmatprep.subr.mxu0 0.0
    %1683 = vmatpush2.msra.mxu0 0.0
    %1684 = vmatprep.subr.mxu0 0.0
    %1685 = vmatpush2.msra.mxu0 0.0
    %1686 = vmatprep.subr.mxu0 0.0
    %1687 = vmatpush2.msra.mxu0 0.0
    %1688 = vmatprep.subr.mxu0 0.0
    %1689 = vmatpush2.msra.mxu0 0.0
    %1690 = vmatprep.mubr.f32.mxu0 0.0
    %1691 = vmatmul.mubr.f32.gmra.mxu0 %v1553
    %v1692 = vpop.f32.mrf.mxu0
    %v1693 = vadd.f32 0.0, %v1692
    %v1694 = vpop.f32.mrf.mxu0
    %v1695 = vadd.f32 0.0, %v1694
    %1696 = vdwg.mxu0
    %v1701 = vrot.slane %v1622, 1
    %v1702 = vrot.slane %v1624, 1
    %v1703 = vrot.slane %v1693, 1
    %v1704 = vrot.slane %v1695, 1
    %v1709 = vadd.f32 %v160, %v1701
    %v1710 = vadd.f32 %v162, %v1702
    %v1711 = vadd.f32 %v231, %v1703
    %v1712 = vadd.f32 %v233, %v1704
    %v1713 = vmul.f32 %v1709, 0.5
    %v1714 = vmul.f32 %v1710, 0.5
    %v1715 = vmul.f32 %v1711, 0.5
    %v1716 = vtanh.pop %v1713
    %v1717 = vtanh.pop %v1714
    %v1718 = vtanh.pop %v1715
    %v1719 = vmul.f32 %v1716, 0.5
    %v1720 = vmul.f32 %v1717, 0.5
    %v1721 = vmul.f32 %v1718, 0.5
    %v1722 = vadd.f32 %v1719, 0.5
    %v1723 = vadd.f32 %v1720, 0.5
    %v1724 = vadd.f32 %v1721, 0.5
    %v1725 = vtanh.pop %v1712
    %v1727 = vrot.slane %v1549, 7
    %v1729 = vmul.f32 %v1723, %v1727
    %v1730 = vmul.f32 %v1722, %v1725
    %v1731 = vadd.f32 %v1729, %v1730
    %v1732 = vtanh.pop %v1731
    %v1733 = vmul.f32 %v1724, %v1732
    %vm1734 = vcmask 1040384
    %v1735 = vsel %vm1734, %v462, %v641
    %vm1736 = vcmask 1041408
    %v1737 = vsel %vm1736, %v1735, %v823
    %vm1738 = vcmask 1042432
    %v1739 = vsel %vm1738, %v1737, %v1005
    %vm1740 = vcmask 1043456
    %v1741 = vsel %vm1740, %v1739, %v1187
    %vm1742 = vcmask 1044480
    %v1743 = vsel %vm1742, %v1741, %v1369
    %vm1744 = vcmask 1045504
    %v1745 = vsel %vm1744, %v1743, %v1551
    %vm1746 = vcmask 1046528
    %v1747 = vsel %vm1746, %v1745, %v1733
    %1748 = vst [vmem:[%s4] sm:$0xff] %v1747
    %1749 = vst [vmem:[%s5 - $0x7] sm:$0x80] %v1731
    // Predicated region
    $region30: #{lstm_forward.1} parent=1 // pred_check
      _
    $region31: #{lstm_forward.1} parent=1 // pred_check_branch
      %1751 = sbr.rel (0) target = $region33
    $region32: #{lstm_forward.1} parent=1 // pred_region
      _
    $region33: #{lstm_forward.1} parent=1 // pred_fallthru
      _
    // Predicated region
    $region34: #{lstm_forward.1} parent=1 // pred_check
      _
    $region35: #{lstm_forward.1} parent=1 // pred_check_branch
      %1753 = sbr.rel (0) target = $region37
    $region36: #{lstm_forward.1} parent=1 // pred_region
      _
    $region37: #{lstm_forward.1} parent=1 // pred_fallthru
      _
    // Predicated region
    $region38: #{lstm_forward.1} parent=1 // pred_check
      _
    $region39: #{lstm_forward.1} parent=1 // pred_check_branch
      %1755 = sbr.rel (0) target = $region41
    $region40: #{lstm_forward.1} parent=1 // pred_region
      _
    $region41: #{lstm_forward.1} parent=1 // pred_fallthru
      _
    // Predicated region
    $region42: #{lstm_forward.1} parent=1 // pred_check
      _
    $region43: #{lstm_forward.1} parent=1 // pred_check_branch
      %1757 = sbr.rel (0) target = $region45
    $region44: #{lstm_forward.1} parent=1 // pred_region
      _
    $region45: #{lstm_forward.1} parent=1 // pred_fallthru
      _
    %1758 = vsyncpa [#allocation3], 1
    %1759 = vsyncpa [#allocation5], 1

</llo_original>
